<compile_context>
chip_gen: v7x
topology: tpu7x:2x2x1
jax: 0.10.0
libtpu: 0.0.40
codegen_flags: <defaults>
</compile_context>

<pallas_src>
import functools
import math

import jax
import jax.numpy as jnp
from jax.experimental import pallas as pl
from jax.experimental.pallas import tpu as pltpu

_LANE = 128
_SUBLANE = 8


def _round_up(x, m):
    return ((x + m - 1) // m) * m


def std_to_pho(std):
    return math.log(math.exp(std) - 1.0)


def _bnn_fused_kernel(x_ref, z_ref, wm_ref, wv_ref, o_ref, *, layer_specs, k_pad):
    """All BNN layers fused; one M-tile of rows per grid step.

    x_ref : (TM, k_pad)            f32   input rows (zero padded)
    z_ref : (TM, L*128)            f32   zeta ~ N(0,1), one 128-lane slab/layer
    wm_ref: (L, k_pad, 128)        bf16  packed transposed means
    wv_ref: (L, k_pad, 128)        f32   packed transposed softplus(pho)^2
    o_ref : (TM, 128)              f32   final-layer output (lane-dense store)

    Zero padding is math-preserving: padded rows/cols give gamma = delta = 0,
    so padded outputs stay exactly 0 through ReLU and later layers.
    """
    n_layers = len(layer_specs)
    h = x_ref[...]                                     # f32 (TM, k_pad)
    for i, (is_prob, apply_relu) in enumerate(layer_specs):
        wm = wm_ref[i]                                 # (k_pad, 128) bf16
        gamma = jnp.dot(h.astype(jnp.bfloat16), wm,
                        preferred_element_type=jnp.float32)
        if is_prob:
            wv = wv_ref[i]                             # (k_pad, 128) f32
            delta = jnp.dot(h * h, wv, preferred_element_type=jnp.float32)
            zeta = z_ref[:, i * _LANE:(i + 1) * _LANE]
            y = gamma + jnp.sqrt(delta) * zeta         # delta >= 0 by construction
        else:
            y = gamma
        if apply_relu:
            y = jnp.maximum(y, 0.0)
        if i + 1 < n_layers:
            h = y[:, :k_pad]          # chain width == packed contraction width
        else:
            o_ref[...] = y.astype(o_ref.dtype)


def init_bnn_params(key, n_in, n_hidden, n_out, prior_std=0.5):
    """Matches BNN.__init__ (bias=False): w_mean ~ N(0,1), w_pho filled."""
    dims = [n_in] + list(n_hidden) + [n_out]
    pho_fill = std_to_pho(prior_std)
    params = []
    for i in range(len(dims) - 1):
        key, sub = jax.random.split(key)
        w_mean = jax.random.normal(sub, (dims[i + 1], dims[i]), dtype=jnp.float32)
        w_pho = jnp.full((dims[i + 1], dims[i]), pho_fill, dtype=jnp.float32)
        params.append((w_mean, w_pho))
    return params


def prepare_bnn_params(params):
    """Hoist parameter-only work out of the per-call forward.

    Transpose to (in, out), compute w_var = softplus(w_pho)**2 once (stable
    softplus), cast means to bf16, and pack all layers into two small buffers:
      wm: (L, k_pad, 128) bf16,  wv: (L, k_pad, 128) f32
    Only the lane (out) dim is padded to 128; the contraction dim is rounded
    up to a sublane multiple.
    """
    in_dims = [int(w.shape[1]) for w, _ in params]
    out_dims = [int(w.shape[0]) for w, _ in params]
    # TODO(synk): generalize packing to feature dims > 128 (not needed here).
    assert max(in_dims) <= _LANE and max(out_dims) <= _LANE
    n_layers = len(params)
    k_pad = _round_up(max(in_dims), _SUBLANE)   # >= every layer's in dim

    wm = jnp.zeros((n_layers, k_pad, _LANE), jnp.bfloat16)
    wv = jnp.zeros((n_layers, k_pad, _LANE), jnp.float32)
    for i, (w_mean, w_pho) in enumerate(params):
        oc, ic = w_mean.shape
        w_var = jnp.square(jax.nn.softplus(w_pho.astype(jnp.float32)))
        wm = wm.at[i, :ic, :oc].set(
            w_mean.astype(jnp.float32).T.astype(jnp.bfloat16))
        wv = wv.at[i, :ic, :oc].set(w_var.T)
    return dict(wm=wm, wv=wv, k_pad=k_pad, in_dims=in_dims, out_dims=out_dims)


def bnn_forward(prepped, x, key, *, is_prob=True):
    """Fused BNN.forward: one pallas_call for all layers over all rows of x.

    x: (N, n_in). Batch Monte-Carlo samples along N to amortize launch cost.
    Returns (y, zeta): y is (N, n_out); zeta is (N, L, 128) — the exact per-row
    per-layer N(0,1) draws the kernel used (for external verification).
    The caller must pass a fresh `key` per forward to get fresh noise.
    """
    wm, wv = prepped["wm"], prepped["wv"]
    n_layers, k_pad, lane = int(wm.shape[0]), int(wm.shape[1]), int(wm.shape[2])
    n = int(x.shape[0])
    n_in = prepped["in_dims"][0]
    n_out = prepped["out_dims"][-1]

    tm = _LANE if n >= _LANE else _round_up(max(n, 1), _SUBLANE)
    m_pad = _round_up(max(n, 1), tm)
    grid = (m_pad // tm,)

    x_pad = jnp.zeros((m_pad, k_pad), jnp.float32).at[:n, :n_in].set(
        x.astype(jnp.float32))
    zeta = jax.random.normal(key, (m_pad, n_layers, lane), dtype=jnp.float32)

    layer_specs = tuple(
        (bool(is_prob) if (i == 0 or i == n_layers - 1) else True,
         i != n_layers - 1)
        for i in range(n_layers))

    # Advisory cost estimate (tiny kernel; keeps XLA scheduling sane).
    flops = sum(2 * m_pad * k_pad * lane * (2 if p else 1) for p, _ in layer_specs)
    transcendentals = sum(m_pad * lane for p, _ in layer_specs if p)
    bytes_accessed = (4 * int(x_pad.size) + 4 * int(zeta.size)
                      + 2 * int(wm.size) + 4 * int(wv.size) + 4 * m_pad * lane)

    kernel = functools.partial(_bnn_fused_kernel,
                               layer_specs=layer_specs, k_pad=k_pad)

    out = pl.pallas_call(
        kernel,
        grid=grid,
        in_specs=[
            pl.BlockSpec((tm, k_pad), lambda i: (i, 0)),
            pl.BlockSpec((tm, n_layers * lane), lambda i: (i, 0)),
            pl.BlockSpec((n_layers, k_pad, lane), lambda i: (0, 0, 0)),
            pl.BlockSpec((n_layers, k_pad, lane), lambda i: (0, 0, 0)),
        ],
        out_specs=pl.BlockSpec((tm, lane), lambda i: (i, 0)),
        out_shape=jax.ShapeDtypeStruct((m_pad, lane), jnp.float32),
        compiler_params=pltpu.CompilerParams(
            dimension_semantics=("parallel",)),
        cost_estimate=pl.CostEstimate(flops=int(flops),
                                      transcendentals=int(transcendentals),
                                      bytes_accessed=int(bytes_accessed)),
    )(x_pad, zeta.reshape(m_pad, n_layers * lane), wm, wv)

    return out[:n, :n_out], zeta[:n]


def ref_forward(params, x, zeta, is_prob=True):
    """Pure-JAX reference replaying the exact zeta draws and the same bf16
    precision on the mean (gamma) path as the kernel."""
    n_layers = len(params)
    h = x.astype(jnp.float32)
    for i, (w_mean, w_pho) in enumerate(params):
        last = i == n_layers - 1
        prob = bool(is_prob) if (i == 0 or last) else True
        oc = w_mean.shape[0]
        wm_t = w_mean.astype(jnp.float32).T.astype(jnp.bfloat16)
        gamma = jnp.dot(h.astype(jnp.bfloat16), wm_t,
                        preferred_element_type=jnp.float32)
        if prob:
            w_var = jnp.square(jax.nn.softplus(w_pho.astype(jnp.float32)))
            delta = jnp.dot(h * h, w_var.T, preferred_element_type=jnp.float32)
            y = gamma + jnp.sqrt(delta) * zeta[:, i, :oc]
        else:
            y = gamma
        h = y if last else jnp.maximum(y, 0.0)
    return h


if __name__ == "__main__":
    # Shapes consistent with the module: n_in=8, n_hidden=[32, 32], n_out=4.
    n_in, n_hidden, n_out = 8, [32, 32], 4
    batch, num_samples = 8, 32          # 256 Monte-Carlo rows batched along M

    root = jax.random.PRNGKey(0)
    k_param, k_input, k_noise_a, k_noise_b = jax.random.split(root, 4)

    params = init_bnn_params(k_param, n_in, n_hidden, n_out, prior_std=0.5)
    prepped = prepare_bnn_params(params)   # hoisted: softplus^2, transpose, bf16, packing

    x = jax.random.normal(k_input, (batch, n_in), dtype=jnp.float32)
    # Batch Monte-Carlo samples along the M/sublane axis: one fused kernel call
    # handles all S*batch rows; each row gets its own independent zeta.
    x_mc = jnp.tile(x, (num_samples, 1))   # (256, 8)

    # Probabilistic forward, checked against a pure-JAX reference that replays
    # the exact noise the kernel consumed.
    y, zeta = bnn_forward(prepped, x_mc, k_noise_a, is_prob=True)
    jax.block_until_ready(y)
    assert y.shape == (num_samples * batch, n_out)
    assert bool(jnp.all(jnp.isfinite(y)))
    y_ref = ref_forward(params, x_mc, zeta, is_prob=True)
    max_err = float(jnp.max(jnp.abs(y - y_ref)))
    assert jnp.allclose(y, y_ref, atol=1e-2, rtol=1e-2), max_err

    # Deterministic forward (is_prob=False on in/out layers; inner layer stays
    # probabilistic, matching the PyTorch module).
    y_det, zeta_det = bnn_forward(prepped, x_mc, k_noise_b, is_prob=False)
    jax.block_until_ready(y_det)
    y_det_ref = ref_forward(params, x_mc, zeta_det, is_prob=False)
    max_err_det = float(jnp.max(jnp.abs(y_det - y_det_ref)))
    assert jnp.allclose(y_det, y_det_ref, atol=1e-2, rtol=1e-2), max_err_det

    print("KERNEL_OK")
</pallas_src>

<mosaic_0001>
module attributes {stable_mosaic.version = 11 : i64} {
  func.func @_bnn_fused_kernel(%arg0: i32, %arg1: memref<128x32xf32, #tpu.memory_space<vmem>>, %arg2: memref<128x384xf32, #tpu.memory_space<vmem>>, %arg3: memref<3x32x128xbf16, #tpu.memory_space<vmem>>, %arg4: memref<3x32x128xf32, #tpu.memory_space<vmem>>, %arg5: memref<128x128xf32, #tpu.memory_space<vmem>>) attributes {dimension_semantics = [#tpu.dimension_semantics<parallel>], iteration_bounds = array<i64: 2>, scalar_prefetch = 0 : i64, scratch_operands = 0 : i64, tpu.core_type = #tpu.core_type<tc>, window_params = [{transform_indices = @transform_0, window_bounds = array<i64: 128, 32>}, {transform_indices = @transform_1, window_bounds = array<i64: 128, 384>}, {pipeline_mode = #tpu.pipeline_mode<synchronous>, transform_indices = @transform_2, window_bounds = array<i64: 3, 32, 128>}, {pipeline_mode = #tpu.pipeline_mode<synchronous>, transform_indices = @transform_3, window_bounds = array<i64: 3, 32, 128>}, {transform_indices = @transform_4, window_bounds = array<i64: 128, 128>}]} {
    %c0 = arith.constant 0 : index
    %c0_0 = arith.constant 0 : index
    %0 = vector.load %arg1[%c0, %c0_0] : memref<128x32xf32, #tpu.memory_space<vmem>>, vector<128x32xf32>
    %c0_1 = arith.constant 0 : index
    %c0_2 = arith.constant 0 : index
    %c0_3 = arith.constant 0 : index
    %1 = vector.load %arg3[%c0_1, %c0_2, %c0_3] : memref<3x32x128xbf16, #tpu.memory_space<vmem>>, vector<1x32x128xbf16>
    %2 = vector.shape_cast %1 : vector<1x32x128xbf16> to vector<32x128xbf16>
    %3 = arith.truncf %0 : vector<128x32xf32> to vector<128x32xbf16>
    %cst = arith.constant dense<0.000000e+00> : vector<128x128xf32>
    %4 = tpu.matmul %3, %2, %cst {dimension_numbers = #tpu.dot_dimension_numbers<[1], [0], [0], [1], [0, 0, 1, 1], [], []>} : vector<128x32xbf16>, vector<32x128xbf16>, vector<128x128xf32> -> vector<128x128xf32>
    %c0_4 = arith.constant 0 : index
    %c0_5 = arith.constant 0 : index
    %c0_6 = arith.constant 0 : index
    %5 = vector.load %arg4[%c0_4, %c0_5, %c0_6] : memref<3x32x128xf32, #tpu.memory_space<vmem>>, vector<1x32x128xf32>
    %6 = vector.shape_cast %5 : vector<1x32x128xf32> to vector<32x128xf32>
    %7 = arith.mulf %0, %0 : vector<128x32xf32>
    %cst_7 = arith.constant dense<0.000000e+00> : vector<128x128xf32>
    %8 = tpu.matmul %7, %6, %cst_7 {dimension_numbers = #tpu.dot_dimension_numbers<[1], [0], [0], [1], [0, 0, 1, 1], [], []>} : vector<128x32xf32>, vector<32x128xf32>, vector<128x128xf32> -> vector<128x128xf32>
    %c0_8 = arith.constant 0 : index
    %c0_9 = arith.constant 0 : index
    %9 = vector.load %arg2[%c0_8, %c0_9] : memref<128x384xf32, #tpu.memory_space<vmem>>, vector<128x128xf32>
    %10 = math.sqrt %8 : vector<128x128xf32>
    %11 = arith.mulf %10, %9 : vector<128x128xf32>
    %12 = arith.addf %4, %11 : vector<128x128xf32>
    %cst_10 = arith.constant 0.000000e+00 : f32
    %13 = vector.broadcast %cst_10 : f32 to vector<128x128xf32>
    %14 = arith.maximumf %12, %13 : vector<128x128xf32>
    %15 = vector.extract_strided_slice %14 {offsets = [0, 0], sizes = [128, 32], strides = [1, 1]} : vector<128x128xf32> to vector<128x32xf32>
    %c1 = arith.constant 1 : index
    %c0_11 = arith.constant 0 : index
    %c0_12 = arith.constant 0 : index
    %16 = vector.load %arg3[%c1, %c0_11, %c0_12] : memref<3x32x128xbf16, #tpu.memory_space<vmem>>, vector<1x32x128xbf16>
    %17 = vector.shape_cast %16 : vector<1x32x128xbf16> to vector<32x128xbf16>
    %18 = arith.truncf %15 : vector<128x32xf32> to vector<128x32xbf16>
    %cst_13 = arith.constant dense<0.000000e+00> : vector<128x128xf32>
    %19 = tpu.matmul %18, %17, %cst_13 {dimension_numbers = #tpu.dot_dimension_numbers<[1], [0], [0], [1], [0, 0, 1, 1], [], []>} : vector<128x32xbf16>, vector<32x128xbf16>, vector<128x128xf32> -> vector<128x128xf32>
    %c1_14 = arith.constant 1 : index
    %c0_15 = arith.constant 0 : index
    %c0_16 = arith.constant 0 : index
    %20 = vector.load %arg4[%c1_14, %c0_15, %c0_16] : memref<3x32x128xf32, #tpu.memory_space<vmem>>, vector<1x32x128xf32>
    %21 = vector.shape_cast %20 : vector<1x32x128xf32> to vector<32x128xf32>
    %22 = arith.mulf %15, %15 : vector<128x32xf32>
    %cst_17 = arith.constant dense<0.000000e+00> : vector<128x128xf32>
    %23 = tpu.matmul %22, %21, %cst_17 {dimension_numbers = #tpu.dot_dimension_numbers<[1], [0], [0], [1], [0, 0, 1, 1], [], []>} : vector<128x32xf32>, vector<32x128xf32>, vector<128x128xf32> -> vector<128x128xf32>
    %c0_18 = arith.constant 0 : index
    %c128 = arith.constant 128 : index
    %24 = vector.load %arg2[%c0_18, %c128] : memref<128x384xf32, #tpu.memory_space<vmem>>, vector<128x128xf32>
    %25 = math.sqrt %23 : vector<128x128xf32>
    %26 = arith.mulf %25, %24 : vector<128x128xf32>
    %27 = arith.addf %19, %26 : vector<128x128xf32>
    %cst_19 = arith.constant 0.000000e+00 : f32
    %28 = vector.broadcast %cst_19 : f32 to vector<128x128xf32>
    %29 = arith.maximumf %27, %28 : vector<128x128xf32>
    %30 = vector.extract_strided_slice %29 {offsets = [0, 0], sizes = [128, 32], strides = [1, 1]} : vector<128x128xf32> to vector<128x32xf32>
    %c2 = arith.constant 2 : index
    %c0_20 = arith.constant 0 : index
    %c0_21 = arith.constant 0 : index
    %31 = vector.load %arg3[%c2, %c0_20, %c0_21] : memref<3x32x128xbf16, #tpu.memory_space<vmem>>, vector<1x32x128xbf16>
    %32 = vector.shape_cast %31 : vector<1x32x128xbf16> to vector<32x128xbf16>
    %33 = arith.truncf %30 : vector<128x32xf32> to vector<128x32xbf16>
    %cst_22 = arith.constant dense<0.000000e+00> : vector<128x128xf32>
    %34 = tpu.matmul %33, %32, %cst_22 {dimension_numbers = #tpu.dot_dimension_numbers<[1], [0], [0], [1], [0, 0, 1, 1], [], []>} : vector<128x32xbf16>, vector<32x128xbf16>, vector<128x128xf32> -> vector<128x128xf32>
    %c2_23 = arith.constant 2 : index
    %c0_24 = arith.constant 0 : index
    %c0_25 = arith.constant 0 : index
    %35 = vector.load %arg4[%c2_23, %c0_24, %c0_25] : memref<3x32x128xf32, #tpu.memory_space<vmem>>, vector<1x32x128xf32>
    %36 = vector.shape_cast %35 : vector<1x32x128xf32> to vector<32x128xf32>
    %37 = arith.mulf %30, %30 : vector<128x32xf32>
    %cst_26 = arith.constant dense<0.000000e+00> : vector<128x128xf32>
    %38 = tpu.matmul %37, %36, %cst_26 {dimension_numbers = #tpu.dot_dimension_numbers<[1], [0], [0], [1], [0, 0, 1, 1], [], []>} : vector<128x32xf32>, vector<32x128xf32>, vector<128x128xf32> -> vector<128x128xf32>
    %c0_27 = arith.constant 0 : index
    %c256 = arith.constant 256 : index
    %39 = vector.load %arg2[%c0_27, %c256] : memref<128x384xf32, #tpu.memory_space<vmem>>, vector<128x128xf32>
    %40 = math.sqrt %38 : vector<128x128xf32>
    %41 = arith.mulf %40, %39 : vector<128x128xf32>
    %42 = arith.addf %34, %41 : vector<128x128xf32>
    %c0_28 = arith.constant 0 : index
    %c0_29 = arith.constant 0 : index
    %43 = vector.load %arg5[%c0_28, %c0_29] : memref<128x128xf32, #tpu.memory_space<vmem>>, vector<128x128xf32>
    tpu.vector_store %arg5[%c0_28, %c0_29], %42 {strides = array<i32>} : memref<128x128xf32, #tpu.memory_space<vmem>>, vector<128x128xf32>,
    return
  }
  func.func @transform_0(%arg0: i32) -> (i32, i32) {
    %c0_i32 = arith.constant 0 : i32
    %c0_i32_0 = arith.constant 0 : i32
    return %arg0, %c0_i32 : i32, i32
  }
  func.func @transform_1(%arg0: i32) -> (i32, i32) {
    %c0_i32 = arith.constant 0 : i32
    %c0_i32_0 = arith.constant 0 : i32
    return %arg0, %c0_i32 : i32, i32
  }
  func.func @transform_2(%arg0: i32) -> (i32, i32, i32) {
    %c0_i32 = arith.constant 0 : i32
    %c0_i32_0 = arith.constant 0 : i32
    %c0_i32_1 = arith.constant 0 : i32
    %c0_i32_2 = arith.constant 0 : i32
    return %c0_i32, %c0_i32_0, %c0_i32_1 : i32, i32, i32
  }
  func.func @transform_3(%arg0: i32) -> (i32, i32, i32) {
    %c0_i32 = arith.constant 0 : i32
    %c0_i32_0 = arith.constant 0 : i32
    %c0_i32_1 = arith.constant 0 : i32
    %c0_i32_2 = arith.constant 0 : i32
    return %c0_i32, %c0_i32_0, %c0_i32_1 : i32, i32, i32
  }
  func.func @transform_4(%arg0: i32) -> (i32, i32) {
    %c0_i32 = arith.constant 0 : i32
    %c0_i32_0 = arith.constant 0 : i32
    return %arg0, %c0_i32 : i32, i32
  }
}

</mosaic_0001>

<llo_original>
// kernel: tpu_custom_call.1
$region0: #{tpu_custom_call.1}
  #allocation0 [shape = 'u32[]', space=smem, size = 0x4, offset = 0x4, fixed_abs, tag = 'smem constant byte address 0x4 - core index']
  #allocation1 [shape = 'u32[144,128]{1,0:T(1,128)}', space=vmem, size = 0x12000, scoped, tag = 'internal scratch']
  %s0 = inlined_call_operand.vmem [shape: f32[256,32], index: 0, kind: input, shape index: {}]
  %s1 = inlined_call_operand.hbm [shape: f32[256,384], index: 1, kind: input, shape index: {}]
  %s2 = inlined_call_operand.vmem [shape: bf16[3,32,128], index: 2, kind: input, shape index: {}]
  %s3 = inlined_call_operand.vmem [shape: f32[3,32,128], index: 3, kind: input, shape index: {}]
  %s4 = inlined_call_operand.hbm [shape: f32[256,128], index: 4, kind: output, shape index: {}]
  %s5 = sld [smem:[#allocation0]]
  $region53: #{tpu_custom_call.1} parent=0
    _
  %s7 = ssub.s32 1, %s5
  %s8 = scalar_select 0, %s7, %s5
  $region1: #{tpu_custom_call.1} parent=0
    #allocation2 [shape = 'u8[393216]{0}', space=vmem, size = 0x60000, scoped, tag = 'input window, operand 1']
    #allocation3 [shape = 's32[2]{0}', space=sflag, size = 0x8, scoped, tag = 'scoped memory for tpu_custom_call.1']
    #allocation4 [shape = 's32[2]{0}', space=sflag, size = 0x8, scoped, tag = 'scoped memory for tpu_custom_call.1']
    #allocation5 [shape = 'u8[131072]{0}', space=vmem, size = 0x20000, scoped, tag = 'output window, operand 0']
    %9 = vsyncpa [#allocation3], 0
    %s10 = scalar_lea.sflag [#allocation3], 1
    %11 = vsyncpa %s10, 0
    %12 = vsyncpa [#allocation4], 0
    %s13 = scalar_lea.sflag [#allocation4], 1
    %14 = vsyncpa %s13, 0
    loop: start=0, step=1, limit=4
    $region2: #{tpu_custom_call.1} parent=1 // loop_pre_header
      _
    $region3: #{tpu_custom_call.1} parent=1 // loop_header
      %s16 = sphi 0, %s20
      %p17 = scmp.ge.s32.totalorder %s16, 4
      %s26 = sphi 0, %s28
      %s29 = sphi 0, %s26
      %s30 = sphi 0, %s29
      %s46 = sphi 0, %s30
      %s52 = sphi 0, %s54
      %s55 = sphi 0, %s52
      %s56 = sphi 0, %s55
      %s72 = sphi 0, %s56
      %s76 = sphi 0, %s76
      %s78 = sphi 0, %s76
      %s79 = sphi 0, %s78
      %s93 = sphi 0, %s79
      %s97 = sphi 0, %s97
      %s99 = sphi 0, %s97
      %s100 = sphi 0, %s99
      %s114 = sphi 0, %s100
      %s120 = sphi 0, %s122
      %s123 = sphi 0, %s120
      %s124 = sphi 0, %s123
      %s140 = sphi 0, %s124
    $region4: #{tpu_custom_call.1} parent=1 // loop_header_branch
      %19 = sbr.rel (%p17) target = $region8
    $region5: #{tpu_custom_call.1} parent=1 // loop_body
      %s21 = ssub.s32 %s16, 1
      %s22 = ssub.s32 %s16, 2
      %s23 = sadd.s32 %s16, 1
      %s24 = ssub.s32 %s16, %s23
      %p25 = scmp.eq.s32.totalorder %s24, 0
      %s27 = sadd.s32 %s26, 1
      %s28 = scalar_select %p25, %s26, %s27
      %p31 = pneg %p25
      %p32 = scmp.eq.s32.totalorder %s16, 1
      %p33 = por %p31, %p32
      %p34 = scmp.ne.s32.totalorder %s26, %s29
      %p35 = scmp.eq.s32.totalorder %s16, 0
      %p36 = por %p34, %p35
      %p37 = scmp.ne.s32.totalorder %s26, %s29
      %p38 = scmp.eq.s32.totalorder %s21, 1
      %p39 = por %p37, %p38
      %p40 = scmp.ne.s32.totalorder %s29, %s30
      %p41 = scmp.eq.s32.totalorder %s21, 0
      %p42 = por %p40, %p41
      %p43 = scmp.ne.s32.totalorder %s29, %s30
      %p44 = scmp.eq.s32.totalorder %s22, 1
      %p45 = por %p43, %p44
      %p47 = scmp.ne.s32.totalorder %s30, %s46
      %p48 = scmp.eq.s32.totalorder %s22, 0
      %p49 = por %p47, %p48
      %s50 = ssub.s32 %s16, %s23
      %p51 = scmp.eq.s32.totalorder %s50, 0
      %s53 = sadd.s32 %s52, 1
      %s54 = scalar_select %p51, %s52, %s53
      %p57 = pneg %p51
      %p58 = scmp.eq.s32.totalorder %s16, 1
      %p59 = por %p57, %p58
      %p60 = scmp.ne.s32.totalorder %s52, %s55
      %p61 = scmp.eq.s32.totalorder %s16, 0
      %p62 = por %p60, %p61
      %p63 = scmp.ne.s32.totalorder %s52, %s55
      %p64 = scmp.eq.s32.totalorder %s21, 1
      %p65 = por %p63, %p64
      %p66 = scmp.ne.s32.totalorder %s55, %s56
      %p67 = scmp.eq.s32.totalorder %s21, 0
      %p68 = por %p66, %p67
      %p69 = scmp.ne.s32.totalorder %s55, %s56
      %p70 = scmp.eq.s32.totalorder %s22, 1
      %p71 = por %p69, %p70
      %p73 = scmp.ne.s32.totalorder %s56, %s72
      %p74 = scmp.eq.s32.totalorder %s22, 0
      %p75 = por %p73, %p74
      %s77 = sadd.s32 %s76, 1
      %p80 = scmp.eq.s32.totalorder %s16, 1
      %p81 = scmp.ne.s32.totalorder %s76, %s78
      %p82 = scmp.eq.s32.totalorder %s16, 0
      %p83 = por %p81, %p82
      %p84 = scmp.ne.s32.totalorder %s76, %s78
      %p85 = scmp.eq.s32.totalorder %s21, 1
      %p86 = por %p84, %p85
      %p87 = scmp.ne.s32.totalorder %s78, %s79
      %p88 = scmp.eq.s32.totalorder %s21, 0
      %p89 = por %p87, %p88
      %p90 = scmp.ne.s32.totalorder %s78, %s79
      %p91 = scmp.eq.s32.totalorder %s22, 1
      %p92 = por %p90, %p91
      %p94 = scmp.ne.s32.totalorder %s79, %s93
      %p95 = scmp.eq.s32.totalorder %s22, 0
      %p96 = por %p94, %p95
      %s98 = sadd.s32 %s97, 1
      %p101 = scmp.eq.s32.totalorder %s16, 1
      %p102 = scmp.ne.s32.totalorder %s97, %s99
      %p103 = scmp.eq.s32.totalorder %s16, 0
      %p104 = por %p102, %p103
      %p105 = scmp.ne.s32.totalorder %s97, %s99
      %p106 = scmp.eq.s32.totalorder %s21, 1
      %p107 = por %p105, %p106
      %p108 = scmp.ne.s32.totalorder %s99, %s100
      %p109 = scmp.eq.s32.totalorder %s21, 0
      %p110 = por %p108, %p109
      %p111 = scmp.ne.s32.totalorder %s99, %s100
      %p112 = scmp.eq.s32.totalorder %s22, 1
      %p113 = por %p111, %p112
      %p115 = scmp.ne.s32.totalorder %s100, %s114
      %p116 = scmp.eq.s32.totalorder %s22, 0
      %p117 = por %p115, %p116
      %s118 = ssub.s32 %s16, %s23
      %p119 = scmp.eq.s32.totalorder %s118, 0
      %s121 = sadd.s32 %s120, 1
      %s122 = scalar_select %p119, %s120, %s121
      %p125 = pneg %p119
      %p126 = scmp.eq.s32.totalorder %s16, 1
      %p127 = por %p125, %p126
      %p128 = scmp.ne.s32.totalorder %s120, %s123
      %p129 = scmp.eq.s32.totalorder %s16, 0
      %p130 = por %p128, %p129
      %p131 = scmp.ne.s32.totalorder %s120, %s123
      %p132 = scmp.eq.s32.totalorder %s21, 1
      %p133 = por %p131, %p132
      %p134 = scmp.ne.s32.totalorder %s123, %s124
      %p135 = scmp.eq.s32.totalorder %s21, 0
      %p136 = por %p134, %p135
      %p137 = scmp.ne.s32.totalorder %s123, %s124
      %p138 = scmp.eq.s32.totalorder %s22, 1
      %p139 = por %p137, %p138
      %p141 = scmp.ne.s32.totalorder %s124, %s140
      %p142 = scmp.eq.s32.totalorder %s22, 0
      %p143 = por %p141, %p142
      %p144 = scmp.le.s32.totalorder 1, %s16
      %p145 = scmp.lt.s32.totalorder %s16, 3
      %p146 = pnand %p144, %p145
      %p147 = pneg %p146
      // Predicated region
      $region9: #{tpu_custom_call.1} parent=5 // pred_check
        _
      $region10: #{tpu_custom_call.1} parent=5 // pred_check_branch
        %149 = sbr.rel (%p146) target = $region12
      $region11: #{tpu_custom_call.1} parent=5 // pred_region
        %s150 = ssub.s32 %s16, 1
        // Predicated region
        $region13: #{tpu_custom_call.1} parent=11 // pred_check
          %p151 = pneg %p89
        $region14: #{tpu_custom_call.1} parent=11 // pred_check_branch
          %153 = sbr.rel (%p151) target = $region16
        $region15: #{tpu_custom_call.1} parent=11 // pred_region
          _
        $region16: #{tpu_custom_call.1} parent=11 // pred_fallthru
          _
        // Predicated region
        $region17: #{tpu_custom_call.1} parent=11 // pred_check
          %p154 = pneg %p110
        $region18: #{tpu_custom_call.1} parent=11 // pred_check_branch
          %156 = sbr.rel (%p154) target = $region20
        $region19: #{tpu_custom_call.1} parent=11 // pred_region
          _
        $region20: #{tpu_custom_call.1} parent=11 // pred_fallthru
          _
      $region12: #{tpu_custom_call.1} parent=5 // pred_fallthru
        _
      %p157 = scmp.lt.s32.totalorder %s16, 2
      // Predicated region
      $region21: #{tpu_custom_call.1} parent=5 // pred_check
        %p158 = pneg %p157
      $region22: #{tpu_custom_call.1} parent=5 // pred_check_branch
        %160 = sbr.rel (%p158) target = $region24
      $region23: #{tpu_custom_call.1} parent=5 // pred_region
        // Predicated region
        $region25: #{tpu_custom_call.1} parent=23 // pred_check
          %p161 = pneg %p36
        $region26: #{tpu_custom_call.1} parent=23 // pred_check_branch
          %163 = sbr.rel (%p161) target = $region28
        $region27: #{tpu_custom_call.1} parent=23 // pred_region
          %s164 = smul.u32 16, %s16
          %p165 = scmp.lt.s32.totalorder %s164, 31
          %s166 = scalar_select %p165, %s164, 31
          %s167 = smul.addr %s166, 8
          %s168 = scalar_lea.vmem %s0, %s167
          %s169 = smul.u32 16, %s16
        $region28: #{tpu_custom_call.1} parent=23 // pred_fallthru
          _
        // Predicated region
        $region29: #{tpu_custom_call.1} parent=23 // pred_check
          %p170 = pneg %p62
        $region30: #{tpu_custom_call.1} parent=23 // pred_check_branch
          %172 = sbr.rel (%p170) target = $region32
        $region31: #{tpu_custom_call.1} parent=23 // pred_region
          %s173 = sand.u32 %s52, 1
          %s174 = scalar_lea.sflag [#allocation3], %s173
          %s175 = sand.u32 %s52, 1
          %s176 = smul.addr %s175, 384
          %s177 = scalar_lea.vmem [#allocation2], %s176
          %s178 = smul.u32 16, %s16
          %s180 = ssub.s32 6144, 6144
          %181 = vsyncadd %s174, %s180
          %s182 = smul.addr %s178, 3
          %s183 = smul.addr %s182, 128
          %s184 = scalar_lea.hbm %s1, %s183
          %s185 = sshll.u32 %s177, 4
          %s186 = int_to_ptr.vmem [resolvable:$true] %s185
          %191 = dma.hbm_to_vmem [thread:$0]  %s184, 6144, %s186, %s174, 384, 384, 24
        $region32: #{tpu_custom_call.1} parent=23 // pred_fallthru
          _
      $region24: #{tpu_custom_call.1} parent=5 // pred_fallthru
        _
      %p192 = scmp.le.s32.totalorder 1, %s16
      %p193 = scmp.lt.s32.totalorder %s16, 3
      %p194 = pnand %p192, %p193
      %p195 = pneg %p194
      // Predicated region
      $region33: #{tpu_custom_call.1} parent=5 // pred_check
        _
      $region34: #{tpu_custom_call.1} parent=5 // pred_check_branch
        %197 = sbr.rel (%p194) target = $region36
      $region35: #{tpu_custom_call.1} parent=5 // pred_region
        %s198 = ssub.s32 %s16, 1
        %s199 = sand.u32 %s55, 1
        %s200 = scalar_lea.sflag [#allocation3], %s199
        %s201 = sand.u32 %s55, 1
        %s202 = smul.addr %s201, 384
        %s203 = scalar_lea.vmem [#allocation2], %s202
        // Predicated region
        $region37: #{tpu_custom_call.1} parent=35 // pred_check
          %p204 = pneg %p68
        $region38: #{tpu_custom_call.1} parent=35 // pred_check_branch
          %206 = sbr.rel (%p204) target = $region40
        $region39: #{tpu_custom_call.1} parent=35 // pred_region
          %207 = dma.done %s200, 6144
        $region40: #{tpu_custom_call.1} parent=35 // pred_fallthru
          _
        %s208 = smul.u32 16, %s21
        %p209 = scmp.lt.s32.totalorder %s208, 31
        %s210 = scalar_select %p209, %s208, 31
        %s211 = smul.addr %s210, 8
        %s212 = scalar_lea.vmem %s0, %s211
        %p213 = pneg %p42
        %p214 = pneg %p39
        %s215 = sand.u32 %s55, 1
        %s216 = scalar_lea.sflag [#allocation3], %s215
        %s217 = sand.u32 %s55, 1
        %s218 = smul.addr %s217, 384
        %s219 = scalar_lea.vmem [#allocation2], %s218
        %p220 = pneg %p68
        %p221 = pneg %p65
        %p222 = pneg %p89
        %p223 = pneg %p86
        %p224 = pneg %p110
        %p225 = pneg %p107
        %p226 = pneg %p136
        %p227 = pneg %p133
        %s228 = sand.u32 %s123, 1
        %s229 = scalar_lea.sflag [#allocation4], %s228
        %s230 = sand.u32 %s123, 1
        %s231 = smul.addr %s230, 128
        %s232 = scalar_lea.vmem [#allocation5], %s231
        %s233 = smul.u32 16, %s21
        %p234 = scmp.lt.s32.totalorder %s233, 31
        %s235 = scalar_select %p234, %s233, 31
        %s236 = smul.addr %s235, 8
        %s237 = scalar_lea.vmem %s0, %s236
        %s238 = smul.u32 16, %s21
        %s239 = smul.u32 16, %s21
        %s240 = smul.u32 16, %s21
        %v242 = vld [vmem:[%s237] sm:$0xff]
        %v243 = vld [vmem:[%s237 + $0x8] sm:$0xff]
        %v244 = vld [vmem:[%s237 + $0x10] sm:$0xff]
        %v245 = vld [vmem:[%s237 + $0x18] sm:$0xff]
        %v246 = vld [vmem:[%s237 + $0x20] sm:$0xff]
        %v247 = vld [vmem:[%s237 + $0x28] sm:$0xff]
        %v248 = vld [vmem:[%s237 + $0x30] sm:$0xff]
        %v249 = vld [vmem:[%s237 + $0x38] sm:$0xff]
        %v250 = vld [vmem:[%s237 + $0x40] sm:$0xff]
        %v251 = vld [vmem:[%s237 + $0x48] sm:$0xff]
        %v252 = vld [vmem:[%s237 + $0x50] sm:$0xff]
        %v253 = vld [vmem:[%s237 + $0x58] sm:$0xff]
        %v254 = vld [vmem:[%s237 + $0x60] sm:$0xff]
        %v255 = vld [vmem:[%s237 + $0x68] sm:$0xff]
        %v256 = vld [vmem:[%s237 + $0x70] sm:$0xff]
        %v257 = vld [vmem:[%s237 + $0x78] sm:$0xff]
        %v258 = vld [vmem:[%s2] sm:$0xf]
        %v259 = vld [vmem:[%s2 + $0x4] sm:$0xf]
        %v260 = vld [vmem:[%s2 + $0x8] sm:$0xf]
        %v261 = vld [vmem:[%s2 + $0xc] sm:$0xf]
        %v262 = vpack.c.bf16 %v243, %v242
        %v263 = vpack.c.bf16 %v245, %v244
        %v264 = vpack.c.bf16 %v247, %v246
        %v265 = vpack.c.bf16 %v249, %v248
        %v266 = vpack.c.bf16 %v251, %v250
        %v267 = vpack.c.bf16 %v253, %v252
        %v268 = vpack.c.bf16 %v255, %v254
        %v269 = vpack.c.bf16 %v257, %v256
        %v270 = vld [vmem:[%s3] sm:$0xff]
        %v271 = vld [vmem:[%s3 + $0x8] sm:$0xff]
        %v272 = vld [vmem:[%s3 + $0x10] sm:$0xff]
        %v273 = vld [vmem:[%s3 + $0x18] sm:$0xff]
        %v274 = vmul.f32 %v242, %v242
        %v275 = vmul.f32 %v243, %v243
        %v276 = vmul.f32 %v244, %v244
        %v277 = vmul.f32 %v245, %v245
        %v278 = vmul.f32 %v246, %v246
        %v279 = vmul.f32 %v247, %v247
        %v280 = vmul.f32 %v248, %v248
        %v281 = vmul.f32 %v249, %v249
        %v282 = vmul.f32 %v250, %v250
        %v283 = vmul.f32 %v251, %v251
        %v284 = vmul.f32 %v252, %v252
        %v285 = vmul.f32 %v253, %v253
        %v286 = vmul.f32 %v254, %v254
        %v287 = vmul.f32 %v255, %v255
        %v288 = vmul.f32 %v256, %v256
        %v289 = vmul.f32 %v257, %v257
        %vm290 = vcmask 261120
        %v292 = vsel %vm290, %v274, 0
        %v295 = vsel %vm290, %v275, 0
        %v298 = vsel %vm290, %v276, 0
        %v301 = vsel %vm290, %v277, 0
        %v304 = vsel %vm290, %v278, 0
        %v307 = vsel %vm290, %v279, 0
        %v310 = vsel %vm290, %v280, 0
        %v313 = vsel %vm290, %v281, 0
        %v316 = vsel %vm290, %v282, 0
        %v319 = vsel %vm290, %v283, 0
        %v322 = vsel %vm290, %v284, 0
        %v325 = vsel %vm290, %v285, 0
        %v328 = vsel %vm290, %v286, 0
        %v331 = vsel %vm290, %v287, 0
        %v334 = vsel %vm290, %v288, 0
        %v337 = vsel %vm290, %v289, 0
        %339 = vmatprep.subr.mxu0 0.0
        %340 = vmatpush1.msra.mxu0 %v270
        %341 = vmatprep.subr.mxu0 0.0
        %342 = vmatpush1.msra.mxu0 %v271
        %343 = vmatprep.subr.mxu0 0.0
        %344 = vmatpush1.msra.mxu0 %v272
        %345 = vmatprep.subr.mxu0 0.0
        %346 = vmatpush1.msra.mxu0 %v273
        %347 = vmatprep.subr.mxu0 0.0
        %348 = vmatpush1.msra.mxu0 0.0
        %349 = vmatprep.subr.mxu0 0.0
        %350 = vmatpush1.msra.mxu0 0.0
        %351 = vmatprep.subr.mxu0 0.0
        %352 = vmatpush1.msra.mxu0 0.0
        %353 = vmatprep.subr.mxu0 0.0
        %354 = vmatpush1.msra.mxu0 0.0
        %355 = vmatprep.subr.mxu0 0.0
        %356 = vmatpush1.msra.mxu0 0.0
        %357 = vmatprep.subr.mxu0 0.0
        %358 = vmatpush1.msra.mxu0 0.0
        %359 = vmatprep.subr.mxu0 0.0
        %360 = vmatpush1.msra.mxu0 0.0
        %361 = vmatprep.subr.mxu0 0.0
        %362 = vmatpush1.msra.mxu0 0.0
        %363 = vmatprep.subr.mxu0 0.0
        %364 = vmatpush1.msra.mxu0 0.0
        %365 = vmatprep.subr.mxu0 0.0
        %366 = vmatpush1.msra.mxu0 0.0
        %367 = vmatprep.subr.mxu0 0.0
        %368 = vmatpush1.msra.mxu0 0.0
        %369 = vmatprep.subr.mxu0 0.0
        %370 = vmatpush1.msra.mxu0 0.0
        %371 = vmatprep.subr.mxu0 0.0
        %372 = vmatpush1.msra.mxu0 0.0
        %373 = vmatprep.subr.mxu0 0.0
        %374 = vmatpush1.msra.mxu0 0.0
        %375 = vmatprep.subr.mxu0 0.0
        %376 = vmatpush1.msra.mxu0 0.0
        %377 = vmatprep.subr.mxu0 0.0
        %378 = vmatpush1.msra.mxu0 0.0
        %379 = vmatprep.subr.mxu0 0.0
        %380 = vmatpush1.msra.mxu0 0.0
        %381 = vmatprep.subr.mxu0 0.0
        %382 = vmatpush1.msra.mxu0 0.0
        %383 = vmatprep.subr.mxu0 0.0
        %384 = vmatpush1.msra.mxu0 0.0
        %385 = vmatprep.subr.mxu0 0.0
        %386 = vmatpush1.msra.mxu0 0.0
        %387 = vmatprep.subr.mxu0 0.0
        %388 = vmatpush1.msra.mxu0 0.0
        %389 = vmatprep.subr.mxu0 0.0
        %390 = vmatpush1.msra.mxu0 0.0
        %391 = vmatprep.subr.mxu0 0.0
        %392 = vmatpush1.msra.mxu0 0.0
        %393 = vmatprep.subr.mxu0 0.0
        %394 = vmatpush1.msra.mxu0 0.0
        %395 = vmatprep.subr.mxu0 0.0
        %396 = vmatpush1.msra.mxu0 0.0
        %397 = vmatprep.subr.mxu0 0.0
        %398 = vmatpush1.msra.mxu0 0.0
        %399 = vmatprep.subr.mxu0 0.0
        %400 = vmatpush1.msra.mxu0 0.0
        %401 = vmatprep.subr.mxu0 0.0
        %402 = vmatpush1.msra.mxu0 0.0
        %403 = vmatprep.mubr.f32.mxu0 0.0
        %404 = vmatmul.mubr.f32.gmra.mrb[0].mxu0 %v292
        %v405 = vpop.f32.mrb[0].mxu0
        %v406 = vadd.f32 0.0, %v405
        %v407 = vpop.f32.mrb[0].mxu0
        %408 = vmatprep.mubr.f32.mxu0 0.0
        %409 = vmatmul.mubr.f32.gmra.mrb[0].mxu0 %v295
        %v410 = vpop.f32.mrb[0].mxu0
        %v411 = vadd.f32 0.0, %v410
        %v412 = vpop.f32.mrb[0].mxu0
        %413 = vmatprep.mubr.f32.mxu0 0.0
        %414 = vmatmul.mubr.f32.gmra.mrb[0].mxu0 %v298
        %v415 = vpop.f32.mrb[0].mxu0
        %v416 = vadd.f32 0.0, %v415
        %v417 = vpop.f32.mrb[0].mxu0
        %418 = vmatprep.mubr.f32.mxu0 0.0
        %419 = vmatmul.mubr.f32.gmra.mrb[0].mxu0 %v301
        %v420 = vpop.f32.mrb[0].mxu0
        %v421 = vadd.f32 0.0, %v420
        %v422 = vpop.f32.mrb[0].mxu0
        %423 = vmatprep.mubr.f32.mxu0 0.0
        %424 = vmatmul.mubr.f32.gmra.mrb[0].mxu0 %v304
        %v425 = vpop.f32.mrb[0].mxu0
        %v426 = vadd.f32 0.0, %v425
        %v427 = vpop.f32.mrb[0].mxu0
        %428 = vmatprep.mubr.f32.mxu0 0.0
        %429 = vmatmul.mubr.f32.gmra.mrb[0].mxu0 %v307
        %v430 = vpop.f32.mrb[0].mxu0
        %v431 = vadd.f32 0.0, %v430
        %v432 = vpop.f32.mrb[0].mxu0
        %433 = vmatprep.mubr.f32.mxu0 0.0
        %434 = vmatmul.mubr.f32.gmra.mrb[0].mxu0 %v310
        %v435 = vpop.f32.mrb[0].mxu0
        %v436 = vadd.f32 0.0, %v435
        %v437 = vpop.f32.mrb[0].mxu0
        %438 = vmatprep.mubr.f32.mxu0 0.0
        %439 = vmatmul.mubr.f32.gmra.mrb[0].mxu0 %v313
        %v440 = vpop.f32.mrb[0].mxu0
        %v441 = vadd.f32 0.0, %v440
        %v442 = vpop.f32.mrb[0].mxu0
        %443 = vmatprep.mubr.f32.mxu0 0.0
        %444 = vmatmul.mubr.f32.gmra.mrb[0].mxu0 %v316
        %v445 = vpop.f32.mrb[0].mxu0
        %v446 = vadd.f32 0.0, %v445
        %v447 = vpop.f32.mrb[0].mxu0
        %448 = vmatprep.mubr.f32.mxu0 0.0
        %449 = vmatmul.mubr.f32.gmra.mrb[0].mxu0 %v319
        %v450 = vpop.f32.mrb[0].mxu0
        %v451 = vadd.f32 0.0, %v450
        %v452 = vpop.f32.mrb[0].mxu0
        %453 = vmatprep.mubr.f32.mxu0 0.0
        %454 = vmatmul.mubr.f32.gmra.mrb[0].mxu0 %v322
        %v455 = vpop.f32.mrb[0].mxu0
        %v456 = vadd.f32 0.0, %v455
        %v457 = vpop.f32.mrb[0].mxu0
        %458 = vmatprep.mubr.f32.mxu0 0.0
        %459 = vmatmul.mubr.f32.gmra.mrb[0].mxu0 %v325
        %v460 = vpop.f32.mrb[0].mxu0
        %v461 = vadd.f32 0.0, %v460
        %v462 = vpop.f32.mrb[0].mxu0
        %463 = vmatprep.mubr.f32.mxu0 0.0
        %464 = vmatmul.mubr.f32.gmra.mrb[0].mxu0 %v328
        %v465 = vpop.f32.mrb[0].mxu0
        %v466 = vadd.f32 0.0, %v465
        %v467 = vpop.f32.mrb[0].mxu0
        %468 = vmatprep.mubr.f32.mxu0 0.0
        %469 = vmatmul.mubr.f32.gmra.mrb[0].mxu0 %v331
        %v470 = vpop.f32.mrb[0].mxu0
        %v471 = vadd.f32 0.0, %v470
        %v472 = vpop.f32.mrb[0].mxu0
        %473 = vmatprep.mubr.f32.mxu0 0.0
        %474 = vmatmul.mubr.f32.gmra.mrb[0].mxu0 %v334
        %v475 = vpop.f32.mrb[0].mxu0
        %v476 = vadd.f32 0.0, %v475
        %v477 = vpop.f32.mrb[0].mxu0
        %478 = vmatprep.mubr.f32.mxu0 0.0
        %479 = vmatmul.mubr.f32.gmra.mrb[0].mxu0 %v337
        %v480 = vpop.f32.mrb[0].mxu0
        %v481 = vadd.f32 0.0, %v480
        %v482 = vpop.f32.mrb[0].mxu0
        %483 = vdwg.mxu0
        %v484 = vld [vmem:[%s203] sm:$0xff]
        %v485 = vld [vmem:[%s203 + $0x18] sm:$0xff]
        %v486 = vld [vmem:[%s203 + $0x30] sm:$0xff]
        %v487 = vld [vmem:[%s203 + $0x48] sm:$0xff]
        %v488 = vld [vmem:[%s203 + $0x60] sm:$0xff]
        %v489 = vld [vmem:[%s203 + $0x78] sm:$0xff]
        %v490 = vld [vmem:[%s203 + $0x90] sm:$0xff]
        %v491 = vld [vmem:[%s203 + $0xa8] sm:$0xff]
        %v492 = vld [vmem:[%s203 + $0xc0] sm:$0xff]
        %v493 = vld [vmem:[%s203 + $0xd8] sm:$0xff]
        %v494 = vld [vmem:[%s203 + $0xf0] sm:$0xff]
        %v495 = vld [vmem:[%s203 + $0x108] sm:$0xff]
        %v496 = vld [vmem:[%s203 + $0x120] sm:$0xff]
        %v497 = vld [vmem:[%s203 + $0x138] sm:$0xff]
        %v498 = vld [vmem:[%s203 + $0x150] sm:$0xff]
        %v499 = vld [vmem:[%s203 + $0x168] sm:$0xff]
        %v500 = vrsqrt.pop %v406
        %v501 = vmul.f32 %v406, %v500
        %vm502 = vcmp.eq.f32.partialorder %v406, inf
        %v503 = vsel %vm502, %v406, %v501
        %vm504 = vcmp.eq.f32.partialorder %v406, 0.0
        %v505 = vand.u32 %v406, 2147483648
        %v506 = vsel %vm504, %v505, %v503
        %v507 = vrsqrt.pop %v411
        %v508 = vmul.f32 %v411, %v507
        %vm509 = vcmp.eq.f32.partialorder %v411, inf
        %v510 = vsel %vm509, %v411, %v508
        %vm511 = vcmp.eq.f32.partialorder %v411, 0.0
        %v512 = vand.u32 %v411, 2147483648
        %v513 = vsel %vm511, %v512, %v510
        %v514 = vrsqrt.pop %v416
        %v515 = vmul.f32 %v416, %v514
        %vm516 = vcmp.eq.f32.partialorder %v416, inf
        %v517 = vsel %vm516, %v416, %v515
        %vm518 = vcmp.eq.f32.partialorder %v416, 0.0
        %v519 = vand.u32 %v416, 2147483648
        %v520 = vsel %vm518, %v519, %v517
        %v521 = vrsqrt.pop %v421
        %v522 = vmul.f32 %v421, %v521
        %vm523 = vcmp.eq.f32.partialorder %v421, inf
        %v524 = vsel %vm523, %v421, %v522
        %vm525 = vcmp.eq.f32.partialorder %v421, 0.0
        %v526 = vand.u32 %v421, 2147483648
        %v527 = vsel %vm525, %v526, %v524
        %v528 = vrsqrt.pop %v426
        %v529 = vmul.f32 %v426, %v528
        %vm530 = vcmp.eq.f32.partialorder %v426, inf
        %v531 = vsel %vm530, %v426, %v529
        %vm532 = vcmp.eq.f32.partialorder %v426, 0.0
        %v533 = vand.u32 %v426, 2147483648
        %v534 = vsel %vm532, %v533, %v531
        %v535 = vrsqrt.pop %v431
        %v536 = vmul.f32 %v431, %v535
        %vm537 = vcmp.eq.f32.partialorder %v431, inf
        %v538 = vsel %vm537, %v431, %v536
        %vm539 = vcmp.eq.f32.partialorder %v431, 0.0
        %v540 = vand.u32 %v431, 2147483648
        %v541 = vsel %vm539, %v540, %v538
        %v542 = vrsqrt.pop %v436
        %v543 = vmul.f32 %v436, %v542
        %vm544 = vcmp.eq.f32.partialorder %v436, inf
        %v545 = vsel %vm544, %v436, %v543
        %vm546 = vcmp.eq.f32.partialorder %v436, 0.0
        %v547 = vand.u32 %v436, 2147483648
        %v548 = vsel %vm546, %v547, %v545
        %v549 = vrsqrt.pop %v441
        %v550 = vmul.f32 %v441, %v549
        %vm551 = vcmp.eq.f32.partialorder %v441, inf
        %v552 = vsel %vm551, %v441, %v550
        %vm553 = vcmp.eq.f32.partialorder %v441, 0.0
        %v554 = vand.u32 %v441, 2147483648
        %v555 = vsel %vm553, %v554, %v552
        %v556 = vrsqrt.pop %v446
        %v557 = vmul.f32 %v446, %v556
        %vm558 = vcmp.eq.f32.partialorder %v446, inf
        %v559 = vsel %vm558, %v446, %v557
        %vm560 = vcmp.eq.f32.partialorder %v446, 0.0
        %v561 = vand.u32 %v446, 2147483648
        %v562 = vsel %vm560, %v561, %v559
        %v563 = vrsqrt.pop %v451
        %v564 = vmul.f32 %v451, %v563
        %vm565 = vcmp.eq.f32.partialorder %v451, inf
        %v566 = vsel %vm565, %v451, %v564
        %vm567 = vcmp.eq.f32.partialorder %v451, 0.0
        %v568 = vand.u32 %v451, 2147483648
        %v569 = vsel %vm567, %v568, %v566
        %v570 = vrsqrt.pop %v456
        %v571 = vmul.f32 %v456, %v570
        %vm572 = vcmp.eq.f32.partialorder %v456, inf
        %v573 = vsel %vm572, %v456, %v571
        %vm574 = vcmp.eq.f32.partialorder %v456, 0.0
        %v575 = vand.u32 %v456, 2147483648
        %v576 = vsel %vm574, %v575, %v573
        %v577 = vrsqrt.pop %v461
        %v578 = vmul.f32 %v461, %v577
        %vm579 = vcmp.eq.f32.partialorder %v461, inf
        %v580 = vsel %vm579, %v461, %v578
        %vm581 = vcmp.eq.f32.partialorder %v461, 0.0
        %v582 = vand.u32 %v461, 2147483648
        %v583 = vsel %vm581, %v582, %v580
        %v584 = vrsqrt.pop %v466
        %v585 = vmul.f32 %v466, %v584
        %vm586 = vcmp.eq.f32.partialorder %v466, inf
        %v587 = vsel %vm586, %v466, %v585
        %vm588 = vcmp.eq.f32.partialorder %v466, 0.0
        %v589 = vand.u32 %v466, 2147483648
        %v590 = vsel %vm588, %v589, %v587
        %v591 = vrsqrt.pop %v471
        %v592 = vmul.f32 %v471, %v591
        %vm593 = vcmp.eq.f32.partialorder %v471, inf
        %v594 = vsel %vm593, %v471, %v592
        %vm595 = vcmp.eq.f32.partialorder %v471, 0.0
        %v596 = vand.u32 %v471, 2147483648
        %v597 = vsel %vm595, %v596, %v594
        %v598 = vrsqrt.pop %v476
        %v599 = vmul.f32 %v476, %v598
        %vm600 = vcmp.eq.f32.partialorder %v476, inf
        %v601 = vsel %vm600, %v476, %v599
        %vm602 = vcmp.eq.f32.partialorder %v476, 0.0
        %v603 = vand.u32 %v476, 2147483648
        %v604 = vsel %vm602, %v603, %v601
        %v605 = vrsqrt.pop %v481
        %v606 = vmul.f32 %v481, %v605
        %vm607 = vcmp.eq.f32.partialorder %v481, inf
        %v608 = vsel %vm607, %v481, %v606
        %vm609 = vcmp.eq.f32.partialorder %v481, 0.0
        %v610 = vand.u32 %v481, 2147483648
        %v611 = vsel %vm609, %v610, %v608
        %v612 = vmul.f32 %v506, %v484
        %v613 = vmul.f32 %v513, %v485
        %v614 = vmul.f32 %v520, %v486
        %v615 = vmul.f32 %v527, %v487
        %v616 = vmul.f32 %v534, %v488
        %v617 = vmul.f32 %v541, %v489
        %v618 = vmul.f32 %v548, %v490
        %v619 = vmul.f32 %v555, %v491
        %v620 = vmul.f32 %v562, %v492
        %v621 = vmul.f32 %v569, %v493
        %v622 = vmul.f32 %v576, %v494
        %v623 = vmul.f32 %v583, %v495
        %v624 = vmul.f32 %v590, %v496
        %v625 = vmul.f32 %v597, %v497
        %v626 = vmul.f32 %v604, %v498
        %v627 = vmul.f32 %v611, %v499
        %v632 = vunpack.c.l.b16 %v258
        %v633 = vunpack.c.l.b16 %v259
        %v634 = vunpack.c.l.b16 %v260
        %v635 = vunpack.c.l.b16 %v261
        %v636 = vpack.c.b16 %v633, %v632
        %v637 = vpack.c.b16 %v635, %v634
        %v641 = vsel %vm290, %v262, 0
        %v644 = vsel %vm290, %v263, 0
        %v647 = vsel %vm290, %v264, 0
        %v650 = vsel %vm290, %v265, 0
        %v653 = vsel %vm290, %v266, 0
        %v656 = vsel %vm290, %v267, 0
        %v659 = vsel %vm290, %v268, 0
        %v662 = vsel %vm290, %v269, 0
        %664 = vmatprep.subr.bf16.mxu0 0
        %665 = vmatpush1.bf16.msra.mxu0 %v636
        %666 = vmatprep.subr.bf16.mxu0 0
        %667 = vmatpush1.bf16.msra.mxu0 %v637
        %668 = vmatprep.subr.bf16.mxu0 0
        %669 = vmatpush1.bf16.msra.mxu0 0
        %670 = vmatprep.subr.bf16.mxu0 0
        %671 = vmatpush1.bf16.msra.mxu0 0
        %672 = vmatprep.subr.bf16.mxu0 0
        %673 = vmatpush1.bf16.msra.mxu0 0
        %674 = vmatprep.subr.bf16.mxu0 0
        %675 = vmatpush1.bf16.msra.mxu0 0
        %676 = vmatprep.subr.bf16.mxu0 0
        %677 = vmatpush1.bf16.msra.mxu0 0
        %678 = vmatprep.subr.bf16.mxu0 0
        %679 = vmatpush1.bf16.msra.mxu0 0
        %680 = vmatprep.subr.bf16.mxu0 0
        %681 = vmatpush1.bf16.msra.mxu0 0
        %682 = vmatprep.subr.bf16.mxu0 0
        %683 = vmatpush1.bf16.msra.mxu0 0
        %684 = vmatprep.subr.bf16.mxu0 0
        %685 = vmatpush1.bf16.msra.mxu0 0
        %686 = vmatprep.subr.bf16.mxu0 0
        %687 = vmatpush1.bf16.msra.mxu0 0
        %688 = vmatprep.subr.bf16.mxu0 0
        %689 = vmatpush1.bf16.msra.mxu0 0
        %690 = vmatprep.subr.bf16.mxu0 0
        %691 = vmatpush1.bf16.msra.mxu0 0
        %692 = vmatprep.subr.bf16.mxu0 0
        %693 = vmatpush1.bf16.msra.mxu0 0
        %694 = vmatprep.subr.bf16.mxu0 0
        %695 = vmatpush1.bf16.msra.mxu0 0
        %696 = vmatprep.mubr.bf16.mxu0 0
        %697 = vmatmul.mubr.bf16.gmra.mrb[0].mxu0 %v641
        %v698 = vpop.f32.mrb[0].mxu0
        %v699 = vadd.f32 %v612, %v698
        %v700 = vpop.f32.mrb[0].mxu0
        %v701 = vpop.f32.mrb[0].mxu0
        %v702 = vadd.f32 %v613, %v701
        %v703 = vpop.f32.mrb[0].mxu0
        %704 = vmatprep.mubr.bf16.mxu0 0
        %705 = vmatmul.mubr.bf16.gmra.mrb[0].mxu0 %v644
        %v706 = vpop.f32.mrb[0].mxu0
        %v707 = vadd.f32 %v614, %v706
        %v708 = vpop.f32.mrb[0].mxu0
        %v709 = vpop.f32.mrb[0].mxu0
        %v710 = vadd.f32 %v615, %v709
        %v711 = vpop.f32.mrb[0].mxu0
        %712 = vmatprep.mubr.bf16.mxu0 0
        %713 = vmatmul.mubr.bf16.gmra.mrb[0].mxu0 %v647
        %v714 = vpop.f32.mrb[0].mxu0
        %v715 = vadd.f32 %v616, %v714
        %v716 = vpop.f32.mrb[0].mxu0
        %v717 = vpop.f32.mrb[0].mxu0
        %v718 = vadd.f32 %v617, %v717
        %v719 = vpop.f32.mrb[0].mxu0
        %720 = vmatprep.mubr.bf16.mxu0 0
        %721 = vmatmul.mubr.bf16.gmra.mrb[0].mxu0 %v650
        %v722 = vpop.f32.mrb[0].mxu0
        %v723 = vadd.f32 %v618, %v722
        %v724 = vpop.f32.mrb[0].mxu0
        %v725 = vpop.f32.mrb[0].mxu0
        %v726 = vadd.f32 %v619, %v725
        %v727 = vpop.f32.mrb[0].mxu0
        %728 = vmatprep.mubr.bf16.mxu0 0
        %729 = vmatmul.mubr.bf16.gmra.mrb[0].mxu0 %v653
        %v730 = vpop.f32.mrb[0].mxu0
        %v731 = vadd.f32 %v620, %v730
        %v732 = vpop.f32.mrb[0].mxu0
        %v733 = vpop.f32.mrb[0].mxu0
        %v734 = vadd.f32 %v621, %v733
        %v735 = vpop.f32.mrb[0].mxu0
        %736 = vmatprep.mubr.bf16.mxu0 0
        %737 = vmatmul.mubr.bf16.gmra.mrb[0].mxu0 %v656
        %v738 = vpop.f32.mrb[0].mxu0
        %v739 = vadd.f32 %v622, %v738
        %v740 = vpop.f32.mrb[0].mxu0
        %v741 = vpop.f32.mrb[0].mxu0
        %v742 = vadd.f32 %v623, %v741
        %v743 = vpop.f32.mrb[0].mxu0
        %744 = vmatprep.mubr.bf16.mxu0 0
        %745 = vmatmul.mubr.bf16.gmra.mrb[0].mxu0 %v659
        %v746 = vpop.f32.mrb[0].mxu0
        %v747 = vadd.f32 %v624, %v746
        %v748 = vpop.f32.mrb[0].mxu0
        %v749 = vpop.f32.mrb[0].mxu0
        %v750 = vadd.f32 %v625, %v749
        %v751 = vpop.f32.mrb[0].mxu0
        %752 = vmatprep.mubr.bf16.mxu0 0
        %753 = vmatmul.mubr.bf16.gmra.mrb[0].mxu0 %v662
        %v754 = vpop.f32.mrb[0].mxu0
        %v755 = vadd.f32 %v626, %v754
        %v756 = vpop.f32.mrb[0].mxu0
        %v757 = vpop.f32.mrb[0].mxu0
        %v758 = vadd.f32 %v627, %v757
        %v759 = vpop.f32.mrb[0].mxu0
        %760 = vdwg.mxu0
        %v761 = vmax.f32 %v699, 0.0
        %v762 = vmax.f32 %v702, 0.0
        %v763 = vmax.f32 %v707, 0.0
        %v764 = vmax.f32 %v710, 0.0
        %v765 = vmax.f32 %v715, 0.0
        %v766 = vmax.f32 %v718, 0.0
        %v767 = vmax.f32 %v723, 0.0
        %v768 = vmax.f32 %v726, 0.0
        %v769 = vmax.f32 %v731, 0.0
        %v770 = vmax.f32 %v734, 0.0
        %v771 = vmax.f32 %v739, 0.0
        %v772 = vmax.f32 %v742, 0.0
        %v773 = vmax.f32 %v747, 0.0
        %v774 = vmax.f32 %v750, 0.0
        %v775 = vmax.f32 %v755, 0.0
        %v776 = vmax.f32 %v758, 0.0
        %s777 = scalar_lea.vmem %s2, 16
        %v778 = vld [vmem:[%s777] sm:$0xf]
        %v779 = vld [vmem:[%s777 + $0x4] sm:$0xf]
        %v780 = vld [vmem:[%s777 + $0x8] sm:$0xf]
        %v781 = vld [vmem:[%s777 + $0xc] sm:$0xf]
        %v782 = vpack.c.bf16 %v762, %v761
        %v783 = vpack.c.bf16 %v764, %v763
        %v784 = vpack.c.bf16 %v766, %v765
        %v785 = vpack.c.bf16 %v768, %v767
        %v786 = vpack.c.bf16 %v770, %v769
        %v787 = vpack.c.bf16 %v772, %v771
        %v788 = vpack.c.bf16 %v774, %v773
        %v789 = vpack.c.bf16 %v776, %v775
        %s790 = scalar_lea.vmem %s3, 32
        %v791 = vld [vmem:[%s790] sm:$0xff]
        %v792 = vld [vmem:[%s790 + $0x8] sm:$0xff]
        %v793 = vld [vmem:[%s790 + $0x10] sm:$0xff]
        %v794 = vld [vmem:[%s790 + $0x18] sm:$0xff]
        %v795 = vmul.f32 %v761, %v761
        %v796 = vmul.f32 %v762, %v762
        %v797 = vmul.f32 %v763, %v763
        %v798 = vmul.f32 %v764, %v764
        %v799 = vmul.f32 %v765, %v765
        %v800 = vmul.f32 %v766, %v766
        %v801 = vmul.f32 %v767, %v767
        %v802 = vmul.f32 %v768, %v768
        %v803 = vmul.f32 %v769, %v769
        %v804 = vmul.f32 %v770, %v770
        %v805 = vmul.f32 %v771, %v771
        %v806 = vmul.f32 %v772, %v772
        %v807 = vmul.f32 %v773, %v773
        %v808 = vmul.f32 %v774, %v774
        %v809 = vmul.f32 %v775, %v775
        %v810 = vmul.f32 %v776, %v776
        %v812 = vsel %vm290, %v795, 0
        %v815 = vsel %vm290, %v796, 0
        %v818 = vsel %vm290, %v797, 0
        %v821 = vsel %vm290, %v798, 0
        %v824 = vsel %vm290, %v799, 0
        %v827 = vsel %vm290, %v800, 0
        %v830 = vsel %vm290, %v801, 0
        %v833 = vsel %vm290, %v802, 0
        %v836 = vsel %vm290, %v803, 0
        %v839 = vsel %vm290, %v804, 0
        %v842 = vsel %vm290, %v805, 0
        %v845 = vsel %vm290, %v806, 0
        %v848 = vsel %vm290, %v807, 0
        %v851 = vsel %vm290, %v808, 0
        %v854 = vsel %vm290, %v809, 0
        %v857 = vsel %vm290, %v810, 0
        %859 = vmatprep.subr.mxu0 0.0
        %860 = vmatpush1.msra.mxu0 %v791
        %861 = vmatprep.subr.mxu0 0.0
        %862 = vmatpush1.msra.mxu0 %v792
        %863 = vmatprep.subr.mxu0 0.0
        %864 = vmatpush1.msra.mxu0 %v793
        %865 = vmatprep.subr.mxu0 0.0
        %866 = vmatpush1.msra.mxu0 %v794
        %867 = vmatprep.subr.mxu0 0.0
        %868 = vmatpush1.msra.mxu0 0.0
        %869 = vmatprep.subr.mxu0 0.0
        %870 = vmatpush1.msra.mxu0 0.0
        %871 = vmatprep.subr.mxu0 0.0
        %872 = vmatpush1.msra.mxu0 0.0
        %873 = vmatprep.subr.mxu0 0.0
        %874 = vmatpush1.msra.mxu0 0.0
        %875 = vmatprep.subr.mxu0 0.0
        %876 = vmatpush1.msra.mxu0 0.0
        %877 = vmatprep.subr.mxu0 0.0
        %878 = vmatpush1.msra.mxu0 0.0
        %879 = vmatprep.subr.mxu0 0.0
        %880 = vmatpush1.msra.mxu0 0.0
        %881 = vmatprep.subr.mxu0 0.0
        %882 = vmatpush1.msra.mxu0 0.0
        %883 = vmatprep.subr.mxu0 0.0
        %884 = vmatpush1.msra.mxu0 0.0
        %885 = vmatprep.subr.mxu0 0.0
        %886 = vmatpush1.msra.mxu0 0.0
        %887 = vmatprep.subr.mxu0 0.0
        %888 = vmatpush1.msra.mxu0 0.0
        %889 = vmatprep.subr.mxu0 0.0
        %890 = vmatpush1.msra.mxu0 0.0
        %891 = vmatprep.subr.mxu0 0.0
        %892 = vmatpush1.msra.mxu0 0.0
        %893 = vmatprep.subr.mxu0 0.0
        %894 = vmatpush1.msra.mxu0 0.0
        %895 = vmatprep.subr.mxu0 0.0
        %896 = vmatpush1.msra.mxu0 0.0
        %897 = vmatprep.subr.mxu0 0.0
        %898 = vmatpush1.msra.mxu0 0.0
        %899 = vmatprep.subr.mxu0 0.0
        %900 = vmatpush1.msra.mxu0 0.0
        %901 = vmatprep.subr.mxu0 0.0
        %902 = vmatpush1.msra.mxu0 0.0
        %903 = vmatprep.subr.mxu0 0.0
        %904 = vmatpush1.msra.mxu0 0.0
        %905 = vmatprep.subr.mxu0 0.0
        %906 = vmatpush1.msra.mxu0 0.0
        %907 = vmatprep.subr.mxu0 0.0
        %908 = vmatpush1.msra.mxu0 0.0
        %909 = vmatprep.subr.mxu0 0.0
        %910 = vmatpush1.msra.mxu0 0.0
        %911 = vmatprep.subr.mxu0 0.0
        %912 = vmatpush1.msra.mxu0 0.0
        %913 = vmatprep.subr.mxu0 0.0
        %914 = vmatpush1.msra.mxu0 0.0
        %915 = vmatprep.subr.mxu0 0.0
        %916 = vmatpush1.msra.mxu0 0.0
        %917 = vmatprep.subr.mxu0 0.0
        %918 = vmatpush1.msra.mxu0 0.0
        %919 = vmatprep.subr.mxu0 0.0
        %920 = vmatpush1.msra.mxu0 0.0
        %921 = vmatprep.subr.mxu0 0.0
        %922 = vmatpush1.msra.mxu0 0.0
        %923 = vmatprep.mubr.f32.mxu0 0.0
        %924 = vmatmul.mubr.f32.gmra.mrb[0].mxu0 %v812
        %v925 = vpop.f32.mrb[0].mxu0
        %v926 = vadd.f32 0.0, %v925
        %v927 = vpop.f32.mrb[0].mxu0
        %928 = vmatprep.mubr.f32.mxu0 0.0
        %929 = vmatmul.mubr.f32.gmra.mrb[0].mxu0 %v815
        %v930 = vpop.f32.mrb[0].mxu0
        %v931 = vadd.f32 0.0, %v930
        %v932 = vpop.f32.mrb[0].mxu0
        %933 = vmatprep.mubr.f32.mxu0 0.0
        %934 = vmatmul.mubr.f32.gmra.mrb[0].mxu0 %v818
        %v935 = vpop.f32.mrb[0].mxu0
        %v936 = vadd.f32 0.0, %v935
        %v937 = vpop.f32.mrb[0].mxu0
        %938 = vmatprep.mubr.f32.mxu0 0.0
        %939 = vmatmul.mubr.f32.gmra.mrb[0].mxu0 %v821
        %v940 = vpop.f32.mrb[0].mxu0
        %v941 = vadd.f32 0.0, %v940
        %v942 = vpop.f32.mrb[0].mxu0
        %943 = vmatprep.mubr.f32.mxu0 0.0
        %944 = vmatmul.mubr.f32.gmra.mrb[0].mxu0 %v824
        %v945 = vpop.f32.mrb[0].mxu0
        %v946 = vadd.f32 0.0, %v945
        %v947 = vpop.f32.mrb[0].mxu0
        %948 = vmatprep.mubr.f32.mxu0 0.0
        %949 = vmatmul.mubr.f32.gmra.mrb[0].mxu0 %v827
        %v950 = vpop.f32.mrb[0].mxu0
        %v951 = vadd.f32 0.0, %v950
        %v952 = vpop.f32.mrb[0].mxu0
        %953 = vmatprep.mubr.f32.mxu0 0.0
        %954 = vmatmul.mubr.f32.gmra.mrb[0].mxu0 %v830
        %v955 = vpop.f32.mrb[0].mxu0
        %v956 = vadd.f32 0.0, %v955
        %v957 = vpop.f32.mrb[0].mxu0
        %958 = vmatprep.mubr.f32.mxu0 0.0
        %959 = vmatmul.mubr.f32.gmra.mrb[0].mxu0 %v833
        %v960 = vpop.f32.mrb[0].mxu0
        %v961 = vadd.f32 0.0, %v960
        %v962 = vpop.f32.mrb[0].mxu0
        %963 = vmatprep.mubr.f32.mxu0 0.0
        %964 = vmatmul.mubr.f32.gmra.mrb[0].mxu0 %v836
        %v965 = vpop.f32.mrb[0].mxu0
        %v966 = vadd.f32 0.0, %v965
        %v967 = vpop.f32.mrb[0].mxu0
        %968 = vmatprep.mubr.f32.mxu0 0.0
        %969 = vmatmul.mubr.f32.gmra.mrb[0].mxu0 %v839
        %v970 = vpop.f32.mrb[0].mxu0
        %v971 = vadd.f32 0.0, %v970
        %v972 = vpop.f32.mrb[0].mxu0
        %973 = vmatprep.mubr.f32.mxu0 0.0
        %974 = vmatmul.mubr.f32.gmra.mrb[0].mxu0 %v842
        %v975 = vpop.f32.mrb[0].mxu0
        %v976 = vadd.f32 0.0, %v975
        %v977 = vpop.f32.mrb[0].mxu0
        %978 = vmatprep.mubr.f32.mxu0 0.0
        %979 = vmatmul.mubr.f32.gmra.mrb[0].mxu0 %v845
        %v980 = vpop.f32.mrb[0].mxu0
        %v981 = vadd.f32 0.0, %v980
        %v982 = vpop.f32.mrb[0].mxu0
        %983 = vmatprep.mubr.f32.mxu0 0.0
        %984 = vmatmul.mubr.f32.gmra.mrb[0].mxu0 %v848
        %v985 = vpop.f32.mrb[0].mxu0
        %v986 = vadd.f32 0.0, %v985
        %v987 = vpop.f32.mrb[0].mxu0
        %988 = vmatprep.mubr.f32.mxu0 0.0
        %989 = vmatmul.mubr.f32.gmra.mrb[0].mxu0 %v851
        %v990 = vpop.f32.mrb[0].mxu0
        %v991 = vadd.f32 0.0, %v990
        %v992 = vpop.f32.mrb[0].mxu0
        %993 = vmatprep.mubr.f32.mxu0 0.0
        %994 = vmatmul.mubr.f32.gmra.mrb[0].mxu0 %v854
        %v995 = vpop.f32.mrb[0].mxu0
        %v996 = vadd.f32 0.0, %v995
        %v997 = vpop.f32.mrb[0].mxu0
        %998 = vmatprep.mubr.f32.mxu0 0.0
        %999 = vmatmul.mubr.f32.gmra.mrb[0].mxu0 %v857
        %v1000 = vpop.f32.mrb[0].mxu0
        %v1001 = vadd.f32 0.0, %v1000
        %v1002 = vpop.f32.mrb[0].mxu0
        %1003 = vdwg.mxu0
        %v1004 = vld [vmem:[%s203 + $0x8] sm:$0xff]
        %v1005 = vld [vmem:[%s203 + $0x20] sm:$0xff]
        %v1006 = vld [vmem:[%s203 + $0x38] sm:$0xff]
        %v1007 = vld [vmem:[%s203 + $0x50] sm:$0xff]
        %v1008 = vld [vmem:[%s203 + $0x68] sm:$0xff]
        %v1009 = vld [vmem:[%s203 + $0x80] sm:$0xff]
        %v1010 = vld [vmem:[%s203 + $0x98] sm:$0xff]
        %v1011 = vld [vmem:[%s203 + $0xb0] sm:$0xff]
        %v1012 = vld [vmem:[%s203 + $0xc8] sm:$0xff]
        %v1013 = vld [vmem:[%s203 + $0xe0] sm:$0xff]
        %v1014 = vld [vmem:[%s203 + $0xf8] sm:$0xff]
        %v1015 = vld [vmem:[%s203 + $0x110] sm:$0xff]
        %v1016 = vld [vmem:[%s203 + $0x128] sm:$0xff]
        %v1017 = vld [vmem:[%s203 + $0x140] sm:$0xff]
        %v1018 = vld [vmem:[%s203 + $0x158] sm:$0xff]
        %v1019 = vld [vmem:[%s203 + $0x170] sm:$0xff]
        %v1020 = vrsqrt.pop %v926
        %v1021 = vmul.f32 %v926, %v1020
        %vm1022 = vcmp.eq.f32.partialorder %v926, inf
        %v1023 = vsel %vm1022, %v926, %v1021
        %vm1024 = vcmp.eq.f32.partialorder %v926, 0.0
        %v1025 = vand.u32 %v926, 2147483648
        %v1026 = vsel %vm1024, %v1025, %v1023
        %v1027 = vrsqrt.pop %v931
        %v1028 = vmul.f32 %v931, %v1027
        %vm1029 = vcmp.eq.f32.partialorder %v931, inf
        %v1030 = vsel %vm1029, %v931, %v1028
        %vm1031 = vcmp.eq.f32.partialorder %v931, 0.0
        %v1032 = vand.u32 %v931, 2147483648
        %v1033 = vsel %vm1031, %v1032, %v1030
        %v1034 = vrsqrt.pop %v936
        %v1035 = vmul.f32 %v936, %v1034
        %vm1036 = vcmp.eq.f32.partialorder %v936, inf
        %v1037 = vsel %vm1036, %v936, %v1035
        %vm1038 = vcmp.eq.f32.partialorder %v936, 0.0
        %v1039 = vand.u32 %v936, 2147483648
        %v1040 = vsel %vm1038, %v1039, %v1037
        %v1041 = vrsqrt.pop %v941
        %v1042 = vmul.f32 %v941, %v1041
        %vm1043 = vcmp.eq.f32.partialorder %v941, inf
        %v1044 = vsel %vm1043, %v941, %v1042
        %vm1045 = vcmp.eq.f32.partialorder %v941, 0.0
        %v1046 = vand.u32 %v941, 2147483648
        %v1047 = vsel %vm1045, %v1046, %v1044
        %v1048 = vrsqrt.pop %v946
        %v1049 = vmul.f32 %v946, %v1048
        %vm1050 = vcmp.eq.f32.partialorder %v946, inf
        %v1051 = vsel %vm1050, %v946, %v1049
        %vm1052 = vcmp.eq.f32.partialorder %v946, 0.0
        %v1053 = vand.u32 %v946, 2147483648
        %v1054 = vsel %vm1052, %v1053, %v1051
        %v1055 = vrsqrt.pop %v951
        %v1056 = vmul.f32 %v951, %v1055
        %vm1057 = vcmp.eq.f32.partialorder %v951, inf
        %v1058 = vsel %vm1057, %v951, %v1056
        %vm1059 = vcmp.eq.f32.partialorder %v951, 0.0
        %v1060 = vand.u32 %v951, 2147483648
        %v1061 = vsel %vm1059, %v1060, %v1058
        %v1062 = vrsqrt.pop %v956
        %v1063 = vmul.f32 %v956, %v1062
        %vm1064 = vcmp.eq.f32.partialorder %v956, inf
        %v1065 = vsel %vm1064, %v956, %v1063
        %vm1066 = vcmp.eq.f32.partialorder %v956, 0.0
        %v1067 = vand.u32 %v956, 2147483648
        %v1068 = vsel %vm1066, %v1067, %v1065
        %v1069 = vrsqrt.pop %v961
        %v1070 = vmul.f32 %v961, %v1069
        %vm1071 = vcmp.eq.f32.partialorder %v961, inf
        %v1072 = vsel %vm1071, %v961, %v1070
        %vm1073 = vcmp.eq.f32.partialorder %v961, 0.0
        %v1074 = vand.u32 %v961, 2147483648
        %v1075 = vsel %vm1073, %v1074, %v1072
        %v1076 = vrsqrt.pop %v966
        %v1077 = vmul.f32 %v966, %v1076
        %vm1078 = vcmp.eq.f32.partialorder %v966, inf
        %v1079 = vsel %vm1078, %v966, %v1077
        %vm1080 = vcmp.eq.f32.partialorder %v966, 0.0
        %v1081 = vand.u32 %v966, 2147483648
        %v1082 = vsel %vm1080, %v1081, %v1079
        %v1083 = vrsqrt.pop %v971
        %v1084 = vmul.f32 %v971, %v1083
        %vm1085 = vcmp.eq.f32.partialorder %v971, inf
        %v1086 = vsel %vm1085, %v971, %v1084
        %vm1087 = vcmp.eq.f32.partialorder %v971, 0.0
        %v1088 = vand.u32 %v971, 2147483648
        %v1089 = vsel %vm1087, %v1088, %v1086
        %v1090 = vrsqrt.pop %v976
        %v1091 = vmul.f32 %v976, %v1090
        %vm1092 = vcmp.eq.f32.partialorder %v976, inf
        %v1093 = vsel %vm1092, %v976, %v1091
        %vm1094 = vcmp.eq.f32.partialorder %v976, 0.0
        %v1095 = vand.u32 %v976, 2147483648
        %v1096 = vsel %vm1094, %v1095, %v1093
        %v1097 = vrsqrt.pop %v981
        %v1098 = vmul.f32 %v981, %v1097
        %vm1099 = vcmp.eq.f32.partialorder %v981, inf
        %v1100 = vsel %vm1099, %v981, %v1098
        %vm1101 = vcmp.eq.f32.partialorder %v981, 0.0
        %v1102 = vand.u32 %v981, 2147483648
        %v1103 = vsel %vm1101, %v1102, %v1100
        %v1104 = vrsqrt.pop %v986
        %v1105 = vmul.f32 %v986, %v1104
        %vm1106 = vcmp.eq.f32.partialorder %v986, inf
        %v1107 = vsel %vm1106, %v986, %v1105
        %vm1108 = vcmp.eq.f32.partialorder %v986, 0.0
        %v1109 = vand.u32 %v986, 2147483648
        %v1110 = vsel %vm1108, %v1109, %v1107
        %v1111 = vrsqrt.pop %v991
        %v1112 = vmul.f32 %v991, %v1111
        %vm1113 = vcmp.eq.f32.partialorder %v991, inf
        %v1114 = vsel %vm1113, %v991, %v1112
        %vm1115 = vcmp.eq.f32.partialorder %v991, 0.0
        %v1116 = vand.u32 %v991, 2147483648
        %v1117 = vsel %vm1115, %v1116, %v1114
        %v1118 = vrsqrt.pop %v996
        %v1119 = vmul.f32 %v996, %v1118
        %vm1120 = vcmp.eq.f32.partialorder %v996, inf
        %v1121 = vsel %vm1120, %v996, %v1119
        %vm1122 = vcmp.eq.f32.partialorder %v996, 0.0
        %v1123 = vand.u32 %v996, 2147483648
        %v1124 = vsel %vm1122, %v1123, %v1121
        %v1125 = vrsqrt.pop %v1001
        %v1126 = vmul.f32 %v1001, %v1125
        %vm1127 = vcmp.eq.f32.partialorder %v1001, inf
        %v1128 = vsel %vm1127, %v1001, %v1126
        %vm1129 = vcmp.eq.f32.partialorder %v1001, 0.0
        %v1130 = vand.u32 %v1001, 2147483648
        %v1131 = vsel %vm1129, %v1130, %v1128
        %v1132 = vmul.f32 %v1026, %v1004
        %v1133 = vmul.f32 %v1033, %v1005
        %v1134 = vmul.f32 %v1040, %v1006
        %v1135 = vmul.f32 %v1047, %v1007
        %v1136 = vmul.f32 %v1054, %v1008
        %v1137 = vmul.f32 %v1061, %v1009
        %v1138 = vmul.f32 %v1068, %v1010
        %v1139 = vmul.f32 %v1075, %v1011
        %v1140 = vmul.f32 %v1082, %v1012
        %v1141 = vmul.f32 %v1089, %v1013
        %v1142 = vmul.f32 %v1096, %v1014
        %v1143 = vmul.f32 %v1103, %v1015
        %v1144 = vmul.f32 %v1110, %v1016
        %v1145 = vmul.f32 %v1117, %v1017
        %v1146 = vmul.f32 %v1124, %v1018
        %v1147 = vmul.f32 %v1131, %v1019
        %v1152 = vunpack.c.l.b16 %v778
        %v1153 = vunpack.c.l.b16 %v779
        %v1154 = vunpack.c.l.b16 %v780
        %v1155 = vunpack.c.l.b16 %v781
        %v1156 = vpack.c.b16 %v1153, %v1152
        %v1157 = vpack.c.b16 %v1155, %v1154
        %v1161 = vsel %vm290, %v782, 0
        %v1164 = vsel %vm290, %v783, 0
        %v1167 = vsel %vm290, %v784, 0
        %v1170 = vsel %vm290, %v785, 0
        %v1173 = vsel %vm290, %v786, 0
        %v1176 = vsel %vm290, %v787, 0
        %v1179 = vsel %vm290, %v788, 0
        %v1182 = vsel %vm290, %v789, 0
        %1184 = vmatprep.subr.bf16.mxu0 0
        %1185 = vmatpush1.bf16.msra.mxu0 %v1156
        %1186 = vmatprep.subr.bf16.mxu0 0
        %1187 = vmatpush1.bf16.msra.mxu0 %v1157
        %1188 = vmatprep.subr.bf16.mxu0 0
        %1189 = vmatpush1.bf16.msra.mxu0 0
        %1190 = vmatprep.subr.bf16.mxu0 0
        %1191 = vmatpush1.bf16.msra.mxu0 0
        %1192 = vmatprep.subr.bf16.mxu0 0
        %1193 = vmatpush1.bf16.msra.mxu0 0
        %1194 = vmatprep.subr.bf16.mxu0 0
        %1195 = vmatpush1.bf16.msra.mxu0 0
        %1196 = vmatprep.subr.bf16.mxu0 0
        %1197 = vmatpush1.bf16.msra.mxu0 0
        %1198 = vmatprep.subr.bf16.mxu0 0
        %1199 = vmatpush1.bf16.msra.mxu0 0
        %1200 = vmatprep.subr.bf16.mxu0 0
        %1201 = vmatpush1.bf16.msra.mxu0 0
        %1202 = vmatprep.subr.bf16.mxu0 0
        %1203 = vmatpush1.bf16.msra.mxu0 0
        %1204 = vmatprep.subr.bf16.mxu0 0
        %1205 = vmatpush1.bf16.msra.mxu0 0
        %1206 = vmatprep.subr.bf16.mxu0 0
        %1207 = vmatpush1.bf16.msra.mxu0 0
        %1208 = vmatprep.subr.bf16.mxu0 0
        %1209 = vmatpush1.bf16.msra.mxu0 0
        %1210 = vmatprep.subr.bf16.mxu0 0
        %1211 = vmatpush1.bf16.msra.mxu0 0
        %1212 = vmatprep.subr.bf16.mxu0 0
        %1213 = vmatpush1.bf16.msra.mxu0 0
        %1214 = vmatprep.subr.bf16.mxu0 0
        %1215 = vmatpush1.bf16.msra.mxu0 0
        %1216 = vmatprep.mubr.bf16.mxu0 0
        %1217 = vmatmul.mubr.bf16.gmra.mrb[0].mxu0 %v1161
        %v1218 = vpop.f32.mrb[0].mxu0
        %v1219 = vadd.f32 %v1132, %v1218
        %v1220 = vpop.f32.mrb[0].mxu0
        %v1221 = vpop.f32.mrb[0].mxu0
        %v1222 = vadd.f32 %v1133, %v1221
        %v1223 = vpop.f32.mrb[0].mxu0
        %1224 = vmatprep.mubr.bf16.mxu0 0
        %1225 = vmatmul.mubr.bf16.gmra.mrb[0].mxu0 %v1164
        %v1226 = vpop.f32.mrb[0].mxu0
        %v1227 = vadd.f32 %v1134, %v1226
        %v1228 = vpop.f32.mrb[0].mxu0
        %v1229 = vpop.f32.mrb[0].mxu0
        %v1230 = vadd.f32 %v1135, %v1229
        %v1231 = vpop.f32.mrb[0].mxu0
        %1232 = vmatprep.mubr.bf16.mxu0 0
        %1233 = vmatmul.mubr.bf16.gmra.mrb[0].mxu0 %v1167
        %v1234 = vpop.f32.mrb[0].mxu0
        %v1235 = vadd.f32 %v1136, %v1234
        %v1236 = vpop.f32.mrb[0].mxu0
        %v1237 = vpop.f32.mrb[0].mxu0
        %v1238 = vadd.f32 %v1137, %v1237
        %v1239 = vpop.f32.mrb[0].mxu0
        %1240 = vmatprep.mubr.bf16.mxu0 0
        %1241 = vmatmul.mubr.bf16.gmra.mrb[0].mxu0 %v1170
        %v1242 = vpop.f32.mrb[0].mxu0
        %v1243 = vadd.f32 %v1138, %v1242
        %v1244 = vpop.f32.mrb[0].mxu0
        %v1245 = vpop.f32.mrb[0].mxu0
        %v1246 = vadd.f32 %v1139, %v1245
        %v1247 = vpop.f32.mrb[0].mxu0
        %1248 = vmatprep.mubr.bf16.mxu0 0
        %1249 = vmatmul.mubr.bf16.gmra.mrb[0].mxu0 %v1173
        %v1250 = vpop.f32.mrb[0].mxu0
        %v1251 = vadd.f32 %v1140, %v1250
        %v1252 = vpop.f32.mrb[0].mxu0
        %v1253 = vpop.f32.mrb[0].mxu0
        %v1254 = vadd.f32 %v1141, %v1253
        %v1255 = vpop.f32.mrb[0].mxu0
        %1256 = vmatprep.mubr.bf16.mxu0 0
        %1257 = vmatmul.mubr.bf16.gmra.mrb[0].mxu0 %v1176
        %v1258 = vpop.f32.mrb[0].mxu0
        %v1259 = vadd.f32 %v1142, %v1258
        %v1260 = vpop.f32.mrb[0].mxu0
        %v1261 = vpop.f32.mrb[0].mxu0
        %v1262 = vadd.f32 %v1143, %v1261
        %v1263 = vpop.f32.mrb[0].mxu0
        %1264 = vmatprep.mubr.bf16.mxu0 0
        %1265 = vmatmul.mubr.bf16.gmra.mrb[0].mxu0 %v1179
        %v1266 = vpop.f32.mrb[0].mxu0
        %v1267 = vadd.f32 %v1144, %v1266
        %v1268 = vpop.f32.mrb[0].mxu0
        %v1269 = vpop.f32.mrb[0].mxu0
        %v1270 = vadd.f32 %v1145, %v1269
        %v1271 = vpop.f32.mrb[0].mxu0
        %1272 = vmatprep.mubr.bf16.mxu0 0
        %1273 = vmatmul.mubr.bf16.gmra.mrb[0].mxu0 %v1182
        %v1274 = vpop.f32.mrb[0].mxu0
        %v1275 = vadd.f32 %v1146, %v1274
        %v1276 = vpop.f32.mrb[0].mxu0
        %v1277 = vpop.f32.mrb[0].mxu0
        %v1278 = vadd.f32 %v1147, %v1277
        %v1279 = vpop.f32.mrb[0].mxu0
        %1280 = vdwg.mxu0
        %v1281 = vmax.f32 %v1219, 0.0
        %v1282 = vmax.f32 %v1222, 0.0
        %v1283 = vmax.f32 %v1227, 0.0
        %v1284 = vmax.f32 %v1230, 0.0
        %v1285 = vmax.f32 %v1235, 0.0
        %v1286 = vmax.f32 %v1238, 0.0
        %v1287 = vmax.f32 %v1243, 0.0
        %v1288 = vmax.f32 %v1246, 0.0
        %v1289 = vmax.f32 %v1251, 0.0
        %v1290 = vmax.f32 %v1254, 0.0
        %v1291 = vmax.f32 %v1259, 0.0
        %v1292 = vmax.f32 %v1262, 0.0
        %v1293 = vmax.f32 %v1267, 0.0
        %v1294 = vmax.f32 %v1270, 0.0
        %v1295 = vmax.f32 %v1275, 0.0
        %v1296 = vmax.f32 %v1278, 0.0
        %s1297 = scalar_lea.vmem %s2, 32
        %v1298 = vld [vmem:[%s1297] sm:$0xf]
        %v1299 = vld [vmem:[%s1297 + $0x4] sm:$0xf]
        %v1300 = vld [vmem:[%s1297 + $0x8] sm:$0xf]
        %v1301 = vld [vmem:[%s1297 + $0xc] sm:$0xf]
        %v1302 = vpack.c.bf16 %v1282, %v1281
        %v1303 = vpack.c.bf16 %v1284, %v1283
        %v1304 = vpack.c.bf16 %v1286, %v1285
        %v1305 = vpack.c.bf16 %v1288, %v1287
        %v1306 = vpack.c.bf16 %v1290, %v1289
        %v1307 = vpack.c.bf16 %v1292, %v1291
        %v1308 = vpack.c.bf16 %v1294, %v1293
        %v1309 = vpack.c.bf16 %v1296, %v1295
        %s1310 = scalar_lea.vmem %s3, 64
        %v1311 = vld [vmem:[%s1310] sm:$0xff]
        %v1312 = vld [vmem:[%s1310 + $0x8] sm:$0xff]
        %v1313 = vld [vmem:[%s1310 + $0x10] sm:$0xff]
        %v1314 = vld [vmem:[%s1310 + $0x18] sm:$0xff]
        %v1315 = vmul.f32 %v1281, %v1281
        %v1316 = vmul.f32 %v1282, %v1282
        %v1317 = vmul.f32 %v1283, %v1283
        %v1318 = vmul.f32 %v1284, %v1284
        %v1319 = vmul.f32 %v1285, %v1285
        %v1320 = vmul.f32 %v1286, %v1286
        %v1321 = vmul.f32 %v1287, %v1287
        %v1322 = vmul.f32 %v1288, %v1288
        %v1323 = vmul.f32 %v1289, %v1289
        %v1324 = vmul.f32 %v1290, %v1290
        %v1325 = vmul.f32 %v1291, %v1291
        %v1326 = vmul.f32 %v1292, %v1292
        %v1327 = vmul.f32 %v1293, %v1293
        %v1328 = vmul.f32 %v1294, %v1294
        %v1329 = vmul.f32 %v1295, %v1295
        %v1330 = vmul.f32 %v1296, %v1296
        %v1332 = vsel %vm290, %v1315, 0
        %v1335 = vsel %vm290, %v1316, 0
        %v1338 = vsel %vm290, %v1317, 0
        %v1341 = vsel %vm290, %v1318, 0
        %v1344 = vsel %vm290, %v1319, 0
        %v1347 = vsel %vm290, %v1320, 0
        %v1350 = vsel %vm290, %v1321, 0
        %v1353 = vsel %vm290, %v1322, 0
        %v1356 = vsel %vm290, %v1323, 0
        %v1359 = vsel %vm290, %v1324, 0
        %v1362 = vsel %vm290, %v1325, 0
        %v1365 = vsel %vm290, %v1326, 0
        %v1368 = vsel %vm290, %v1327, 0
        %v1371 = vsel %vm290, %v1328, 0
        %v1374 = vsel %vm290, %v1329, 0
        %v1377 = vsel %vm290, %v1330, 0
        %1379 = vmatprep.subr.mxu0 0.0
        %1380 = vmatpush1.msra.mxu0 %v1311
        %1381 = vmatprep.subr.mxu0 0.0
        %1382 = vmatpush1.msra.mxu0 %v1312
        %1383 = vmatprep.subr.mxu0 0.0
        %1384 = vmatpush1.msra.mxu0 %v1313
        %1385 = vmatprep.subr.mxu0 0.0
        %1386 = vmatpush1.msra.mxu0 %v1314
        %1387 = vmatprep.subr.mxu0 0.0
        %1388 = vmatpush1.msra.mxu0 0.0
        %1389 = vmatprep.subr.mxu0 0.0
        %1390 = vmatpush1.msra.mxu0 0.0
        %1391 = vmatprep.subr.mxu0 0.0
        %1392 = vmatpush1.msra.mxu0 0.0
        %1393 = vmatprep.subr.mxu0 0.0
        %1394 = vmatpush1.msra.mxu0 0.0
        %1395 = vmatprep.subr.mxu0 0.0
        %1396 = vmatpush1.msra.mxu0 0.0
        %1397 = vmatprep.subr.mxu0 0.0
        %1398 = vmatpush1.msra.mxu0 0.0
        %1399 = vmatprep.subr.mxu0 0.0
        %1400 = vmatpush1.msra.mxu0 0.0
        %1401 = vmatprep.subr.mxu0 0.0
        %1402 = vmatpush1.msra.mxu0 0.0
        %1403 = vmatprep.subr.mxu0 0.0
        %1404 = vmatpush1.msra.mxu0 0.0
        %1405 = vmatprep.subr.mxu0 0.0
        %1406 = vmatpush1.msra.mxu0 0.0
        %1407 = vmatprep.subr.mxu0 0.0
        %1408 = vmatpush1.msra.mxu0 0.0
        %1409 = vmatprep.subr.mxu0 0.0
        %1410 = vmatpush1.msra.mxu0 0.0
        %1411 = vmatprep.subr.mxu0 0.0
        %1412 = vmatpush1.msra.mxu0 0.0
        %1413 = vmatprep.subr.mxu0 0.0
        %1414 = vmatpush1.msra.mxu0 0.0
        %1415 = vmatprep.subr.mxu0 0.0
        %1416 = vmatpush1.msra.mxu0 0.0
        %1417 = vmatprep.subr.mxu0 0.0
        %1418 = vmatpush1.msra.mxu0 0.0
        %1419 = vmatprep.subr.mxu0 0.0
        %1420 = vmatpush1.msra.mxu0 0.0
        %1421 = vmatprep.subr.mxu0 0.0
        %1422 = vmatpush1.msra.mxu0 0.0
        %1423 = vmatprep.subr.mxu0 0.0
        %1424 = vmatpush1.msra.mxu0 0.0
        %1425 = vmatprep.subr.mxu0 0.0
        %1426 = vmatpush1.msra.mxu0 0.0
        %1427 = vmatprep.subr.mxu0 0.0
        %1428 = vmatpush1.msra.mxu0 0.0
        %1429 = vmatprep.subr.mxu0 0.0
        %1430 = vmatpush1.msra.mxu0 0.0
        %1431 = vmatprep.subr.mxu0 0.0
        %1432 = vmatpush1.msra.mxu0 0.0
        %1433 = vmatprep.subr.mxu0 0.0
        %1434 = vmatpush1.msra.mxu0 0.0
        %1435 = vmatprep.subr.mxu0 0.0
        %1436 = vmatpush1.msra.mxu0 0.0
        %1437 = vmatprep.subr.mxu0 0.0
        %1438 = vmatpush1.msra.mxu0 0.0
        %1439 = vmatprep.subr.mxu0 0.0
        %1440 = vmatpush1.msra.mxu0 0.0
        %1441 = vmatprep.subr.mxu0 0.0
        %1442 = vmatpush1.msra.mxu0 0.0
        %1443 = vmatprep.mubr.f32.mxu0 0.0
        %1444 = vmatmul.mubr.f32.gmra.mrb[0].mxu0 %v1332
        %v1445 = vpop.f32.mrb[0].mxu0
        %v1446 = vadd.f32 0.0, %v1445
        %v1447 = vpop.f32.mrb[0].mxu0
        %1448 = vmatprep.mubr.f32.mxu0 0.0
        %1449 = vmatmul.mubr.f32.gmra.mrb[0].mxu0 %v1335
        %v1450 = vpop.f32.mrb[0].mxu0
        %v1451 = vadd.f32 0.0, %v1450
        %v1452 = vpop.f32.mrb[0].mxu0
        %1453 = vmatprep.mubr.f32.mxu0 0.0
        %1454 = vmatmul.mubr.f32.gmra.mrb[0].mxu0 %v1338
        %v1455 = vpop.f32.mrb[0].mxu0
        %v1456 = vadd.f32 0.0, %v1455
        %v1457 = vpop.f32.mrb[0].mxu0
        %1458 = vmatprep.mubr.f32.mxu0 0.0
        %1459 = vmatmul.mubr.f32.gmra.mrb[0].mxu0 %v1341
        %v1460 = vpop.f32.mrb[0].mxu0
        %v1461 = vadd.f32 0.0, %v1460
        %v1462 = vpop.f32.mrb[0].mxu0
        %1463 = vmatprep.mubr.f32.mxu0 0.0
        %1464 = vmatmul.mubr.f32.gmra.mrb[0].mxu0 %v1344
        %v1465 = vpop.f32.mrb[0].mxu0
        %v1466 = vadd.f32 0.0, %v1465
        %v1467 = vpop.f32.mrb[0].mxu0
        %1468 = vmatprep.mubr.f32.mxu0 0.0
        %1469 = vmatmul.mubr.f32.gmra.mrb[0].mxu0 %v1347
        %v1470 = vpop.f32.mrb[0].mxu0
        %v1471 = vadd.f32 0.0, %v1470
        %v1472 = vpop.f32.mrb[0].mxu0
        %1473 = vmatprep.mubr.f32.mxu0 0.0
        %1474 = vmatmul.mubr.f32.gmra.mrb[0].mxu0 %v1350
        %v1475 = vpop.f32.mrb[0].mxu0
        %v1476 = vadd.f32 0.0, %v1475
        %v1477 = vpop.f32.mrb[0].mxu0
        %1478 = vmatprep.mubr.f32.mxu0 0.0
        %1479 = vmatmul.mubr.f32.gmra.mrb[0].mxu0 %v1353
        %v1480 = vpop.f32.mrb[0].mxu0
        %v1481 = vadd.f32 0.0, %v1480
        %v1482 = vpop.f32.mrb[0].mxu0
        %1483 = vmatprep.mubr.f32.mxu0 0.0
        %1484 = vmatmul.mubr.f32.gmra.mrb[0].mxu0 %v1356
        %v1485 = vpop.f32.mrb[0].mxu0
        %v1486 = vadd.f32 0.0, %v1485
        %v1487 = vpop.f32.mrb[0].mxu0
        %1488 = vmatprep.mubr.f32.mxu0 0.0
        %1489 = vmatmul.mubr.f32.gmra.mrb[0].mxu0 %v1359
        %v1490 = vpop.f32.mrb[0].mxu0
        %v1491 = vadd.f32 0.0, %v1490
        %v1492 = vpop.f32.mrb[0].mxu0
        %1493 = vmatprep.mubr.f32.mxu0 0.0
        %1494 = vmatmul.mubr.f32.gmra.mrb[0].mxu0 %v1362
        %v1495 = vpop.f32.mrb[0].mxu0
        %v1496 = vadd.f32 0.0, %v1495
        %v1497 = vpop.f32.mrb[0].mxu0
        %1498 = vmatprep.mubr.f32.mxu0 0.0
        %1499 = vmatmul.mubr.f32.gmra.mrb[0].mxu0 %v1365
        %v1500 = vpop.f32.mrb[0].mxu0
        %v1501 = vadd.f32 0.0, %v1500
        %v1502 = vpop.f32.mrb[0].mxu0
        %1503 = vmatprep.mubr.f32.mxu0 0.0
        %1504 = vmatmul.mubr.f32.gmra.mrb[0].mxu0 %v1368
        %v1505 = vpop.f32.mrb[0].mxu0
        %v1506 = vadd.f32 0.0, %v1505
        %v1507 = vpop.f32.mrb[0].mxu0
        %1508 = vmatprep.mubr.f32.mxu0 0.0
        %1509 = vmatmul.mubr.f32.gmra.mrb[0].mxu0 %v1371
        %v1510 = vpop.f32.mrb[0].mxu0
        %v1511 = vadd.f32 0.0, %v1510
        %v1512 = vpop.f32.mrb[0].mxu0
        %1513 = vmatprep.mubr.f32.mxu0 0.0
        %1514 = vmatmul.mubr.f32.gmra.mrb[0].mxu0 %v1374
        %v1515 = vpop.f32.mrb[0].mxu0
        %v1516 = vadd.f32 0.0, %v1515
        %v1517 = vpop.f32.mrb[0].mxu0
        %1518 = vmatprep.mubr.f32.mxu0 0.0
        %1519 = vmatmul.mubr.f32.gmra.mrb[0].mxu0 %v1377
        %v1520 = vpop.f32.mrb[0].mxu0
        %v1521 = vadd.f32 0.0, %v1520
        %v1522 = vpop.f32.mrb[0].mxu0
        %1523 = vdwg.mxu0
        %v1524 = vld [vmem:[%s203 + $0x10] sm:$0xff]
        %v1525 = vld [vmem:[%s203 + $0x28] sm:$0xff]
        %v1526 = vld [vmem:[%s203 + $0x40] sm:$0xff]
        %v1527 = vld [vmem:[%s203 + $0x58] sm:$0xff]
        %v1528 = vld [vmem:[%s203 + $0x70] sm:$0xff]
        %v1529 = vld [vmem:[%s203 + $0x88] sm:$0xff]
        %v1530 = vld [vmem:[%s203 + $0xa0] sm:$0xff]
        %v1531 = vld [vmem:[%s203 + $0xb8] sm:$0xff]
        %v1532 = vld [vmem:[%s203 + $0xd0] sm:$0xff]
        %v1533 = vld [vmem:[%s203 + $0xe8] sm:$0xff]
        %v1534 = vld [vmem:[%s203 + $0x100] sm:$0xff]
        %v1535 = vld [vmem:[%s203 + $0x118] sm:$0xff]
        %v1536 = vld [vmem:[%s203 + $0x130] sm:$0xff]
        %v1537 = vld [vmem:[%s203 + $0x148] sm:$0xff]
        %v1538 = vld [vmem:[%s203 + $0x160] sm:$0xff]
        %v1539 = vld [vmem:[%s203 + $0x178] sm:$0xff]
        %v1540 = vrsqrt.pop %v1446
        %v1541 = vmul.f32 %v1446, %v1540
        %vm1542 = vcmp.eq.f32.partialorder %v1446, inf
        %v1543 = vsel %vm1542, %v1446, %v1541
        %vm1544 = vcmp.eq.f32.partialorder %v1446, 0.0
        %v1545 = vand.u32 %v1446, 2147483648
        %v1546 = vsel %vm1544, %v1545, %v1543
        %v1547 = vrsqrt.pop %v1451
        %v1548 = vmul.f32 %v1451, %v1547
        %vm1549 = vcmp.eq.f32.partialorder %v1451, inf
        %v1550 = vsel %vm1549, %v1451, %v1548
        %vm1551 = vcmp.eq.f32.partialorder %v1451, 0.0
        %v1552 = vand.u32 %v1451, 2147483648
        %v1553 = vsel %vm1551, %v1552, %v1550
        %v1554 = vrsqrt.pop %v1456
        %v1555 = vmul.f32 %v1456, %v1554
        %vm1556 = vcmp.eq.f32.partialorder %v1456, inf
        %v1557 = vsel %vm1556, %v1456, %v1555
        %vm1558 = vcmp.eq.f32.partialorder %v1456, 0.0
        %v1559 = vand.u32 %v1456, 2147483648
        %v1560 = vsel %vm1558, %v1559, %v1557
        %v1561 = vrsqrt.pop %v1461
        %v1562 = vmul.f32 %v1461, %v1561
        %vm1563 = vcmp.eq.f32.partialorder %v1461, inf
        %v1564 = vsel %vm1563, %v1461, %v1562
        %vm1565 = vcmp.eq.f32.partialorder %v1461, 0.0
        %v1566 = vand.u32 %v1461, 2147483648
        %v1567 = vsel %vm1565, %v1566, %v1564
        %v1568 = vrsqrt.pop %v1466
        %v1569 = vmul.f32 %v1466, %v1568
        %vm1570 = vcmp.eq.f32.partialorder %v1466, inf
        %v1571 = vsel %vm1570, %v1466, %v1569
        %vm1572 = vcmp.eq.f32.partialorder %v1466, 0.0
        %v1573 = vand.u32 %v1466, 2147483648
        %v1574 = vsel %vm1572, %v1573, %v1571
        %v1575 = vrsqrt.pop %v1471
        %v1576 = vmul.f32 %v1471, %v1575
        %vm1577 = vcmp.eq.f32.partialorder %v1471, inf
        %v1578 = vsel %vm1577, %v1471, %v1576
        %vm1579 = vcmp.eq.f32.partialorder %v1471, 0.0
        %v1580 = vand.u32 %v1471, 2147483648
        %v1581 = vsel %vm1579, %v1580, %v1578
        %v1582 = vrsqrt.pop %v1476
        %v1583 = vmul.f32 %v1476, %v1582
        %vm1584 = vcmp.eq.f32.partialorder %v1476, inf
        %v1585 = vsel %vm1584, %v1476, %v1583
        %vm1586 = vcmp.eq.f32.partialorder %v1476, 0.0
        %v1587 = vand.u32 %v1476, 2147483648
        %v1588 = vsel %vm1586, %v1587, %v1585
        %v1589 = vrsqrt.pop %v1481
        %v1590 = vmul.f32 %v1481, %v1589
        %vm1591 = vcmp.eq.f32.partialorder %v1481, inf
        %v1592 = vsel %vm1591, %v1481, %v1590
        %vm1593 = vcmp.eq.f32.partialorder %v1481, 0.0
        %v1594 = vand.u32 %v1481, 2147483648
        %v1595 = vsel %vm1593, %v1594, %v1592
        %v1596 = vrsqrt.pop %v1486
        %v1597 = vmul.f32 %v1486, %v1596
        %vm1598 = vcmp.eq.f32.partialorder %v1486, inf
        %v1599 = vsel %vm1598, %v1486, %v1597
        %vm1600 = vcmp.eq.f32.partialorder %v1486, 0.0
        %v1601 = vand.u32 %v1486, 2147483648
        %v1602 = vsel %vm1600, %v1601, %v1599
        %v1603 = vrsqrt.pop %v1491
        %v1604 = vmul.f32 %v1491, %v1603
        %vm1605 = vcmp.eq.f32.partialorder %v1491, inf
        %v1606 = vsel %vm1605, %v1491, %v1604
        %vm1607 = vcmp.eq.f32.partialorder %v1491, 0.0
        %v1608 = vand.u32 %v1491, 2147483648
        %v1609 = vsel %vm1607, %v1608, %v1606
        %v1610 = vrsqrt.pop %v1496
        %v1611 = vmul.f32 %v1496, %v1610
        %vm1612 = vcmp.eq.f32.partialorder %v1496, inf
        %v1613 = vsel %vm1612, %v1496, %v1611
        %vm1614 = vcmp.eq.f32.partialorder %v1496, 0.0
        %v1615 = vand.u32 %v1496, 2147483648
        %v1616 = vsel %vm1614, %v1615, %v1613
        %v1617 = vrsqrt.pop %v1501
        %v1618 = vmul.f32 %v1501, %v1617
        %vm1619 = vcmp.eq.f32.partialorder %v1501, inf
        %v1620 = vsel %vm1619, %v1501, %v1618
        %vm1621 = vcmp.eq.f32.partialorder %v1501, 0.0
        %v1622 = vand.u32 %v1501, 2147483648
        %v1623 = vsel %vm1621, %v1622, %v1620
        %v1624 = vrsqrt.pop %v1506
        %v1625 = vmul.f32 %v1506, %v1624
        %vm1626 = vcmp.eq.f32.partialorder %v1506, inf
        %v1627 = vsel %vm1626, %v1506, %v1625
        %vm1628 = vcmp.eq.f32.partialorder %v1506, 0.0
        %v1629 = vand.u32 %v1506, 2147483648
        %v1630 = vsel %vm1628, %v1629, %v1627
        %v1631 = vrsqrt.pop %v1511
        %v1632 = vmul.f32 %v1511, %v1631
        %vm1633 = vcmp.eq.f32.partialorder %v1511, inf
        %v1634 = vsel %vm1633, %v1511, %v1632
        %vm1635 = vcmp.eq.f32.partialorder %v1511, 0.0
        %v1636 = vand.u32 %v1511, 2147483648
        %v1637 = vsel %vm1635, %v1636, %v1634
        %v1638 = vrsqrt.pop %v1516
        %v1639 = vmul.f32 %v1516, %v1638
        %vm1640 = vcmp.eq.f32.partialorder %v1516, inf
        %v1641 = vsel %vm1640, %v1516, %v1639
        %vm1642 = vcmp.eq.f32.partialorder %v1516, 0.0
        %v1643 = vand.u32 %v1516, 2147483648
        %v1644 = vsel %vm1642, %v1643, %v1641
        %v1645 = vrsqrt.pop %v1521
        %v1646 = vmul.f32 %v1521, %v1645
        %vm1647 = vcmp.eq.f32.partialorder %v1521, inf
        %v1648 = vsel %vm1647, %v1521, %v1646
        %vm1649 = vcmp.eq.f32.partialorder %v1521, 0.0
        %v1650 = vand.u32 %v1521, 2147483648
        %v1651 = vsel %vm1649, %v1650, %v1648
        %v1652 = vmul.f32 %v1546, %v1524
        %v1653 = vmul.f32 %v1553, %v1525
        %v1654 = vmul.f32 %v1560, %v1526
        %v1655 = vmul.f32 %v1567, %v1527
        %v1656 = vmul.f32 %v1574, %v1528
        %v1657 = vmul.f32 %v1581, %v1529
        %v1658 = vmul.f32 %v1588, %v1530
        %v1659 = vmul.f32 %v1595, %v1531
        %v1660 = vmul.f32 %v1602, %v1532
        %v1661 = vmul.f32 %v1609, %v1533
        %v1662 = vmul.f32 %v1616, %v1534
        %v1663 = vmul.f32 %v1623, %v1535
        %v1664 = vmul.f32 %v1630, %v1536
        %v1665 = vmul.f32 %v1637, %v1537
        %v1666 = vmul.f32 %v1644, %v1538
        %v1667 = vmul.f32 %v1651, %v1539
        %v1672 = vunpack.c.l.b16 %v1298
        %v1673 = vunpack.c.l.b16 %v1299
        %v1674 = vunpack.c.l.b16 %v1300
        %v1675 = vunpack.c.l.b16 %v1301
        %v1676 = vpack.c.b16 %v1673, %v1672
        %v1677 = vpack.c.b16 %v1675, %v1674
        %v1681 = vsel %vm290, %v1302, 0
        %v1684 = vsel %vm290, %v1303, 0
        %v1687 = vsel %vm290, %v1304, 0
        %v1690 = vsel %vm290, %v1305, 0
        %v1693 = vsel %vm290, %v1306, 0
        %v1696 = vsel %vm290, %v1307, 0
        %v1699 = vsel %vm290, %v1308, 0
        %v1702 = vsel %vm290, %v1309, 0
        %1704 = vmatprep.subr.bf16.mxu0 0
        %1705 = vmatpush1.bf16.msra.mxu0 %v1676
        %1706 = vmatprep.subr.bf16.mxu0 0
        %1707 = vmatpush1.bf16.msra.mxu0 %v1677
        %1708 = vmatprep.subr.bf16.mxu0 0
        %1709 = vmatpush1.bf16.msra.mxu0 0
        %1710 = vmatprep.subr.bf16.mxu0 0
        %1711 = vmatpush1.bf16.msra.mxu0 0
        %1712 = vmatprep.subr.bf16.mxu0 0
        %1713 = vmatpush1.bf16.msra.mxu0 0
        %1714 = vmatprep.subr.bf16.mxu0 0
        %1715 = vmatpush1.bf16.msra.mxu0 0
        %1716 = vmatprep.subr.bf16.mxu0 0
        %1717 = vmatpush1.bf16.msra.mxu0 0
        %1718 = vmatprep.subr.bf16.mxu0 0
        %1719 = vmatpush1.bf16.msra.mxu0 0
        %1720 = vmatprep.subr.bf16.mxu0 0
        %1721 = vmatpush1.bf16.msra.mxu0 0
        %1722 = vmatprep.subr.bf16.mxu0 0
        %1723 = vmatpush1.bf16.msra.mxu0 0
        %1724 = vmatprep.subr.bf16.mxu0 0
        %1725 = vmatpush1.bf16.msra.mxu0 0
        %1726 = vmatprep.subr.bf16.mxu0 0
        %1727 = vmatpush1.bf16.msra.mxu0 0
        %1728 = vmatprep.subr.bf16.mxu0 0
        %1729 = vmatpush1.bf16.msra.mxu0 0
        %1730 = vmatprep.subr.bf16.mxu0 0
        %1731 = vmatpush1.bf16.msra.mxu0 0
        %1732 = vmatprep.subr.bf16.mxu0 0
        %1733 = vmatpush1.bf16.msra.mxu0 0
        %1734 = vmatprep.subr.bf16.mxu0 0
        %1735 = vmatpush1.bf16.msra.mxu0 0
        %1736 = vmatprep.mubr.bf16.mxu0 0
        %1737 = vmatmul.mubr.bf16.gmra.mrb[0].mxu0 %v1681
        %v1738 = vpop.f32.mrb[0].mxu0
        %v1739 = vadd.f32 %v1652, %v1738
        %v1740 = vpop.f32.mrb[0].mxu0
        %v1741 = vpop.f32.mrb[0].mxu0
        %v1742 = vadd.f32 %v1653, %v1741
        %v1743 = vpop.f32.mrb[0].mxu0
        %1744 = vmatprep.mubr.bf16.mxu0 0
        %1745 = vmatmul.mubr.bf16.gmra.mrb[0].mxu0 %v1684
        %v1746 = vpop.f32.mrb[0].mxu0
        %v1747 = vadd.f32 %v1654, %v1746
        %v1748 = vpop.f32.mrb[0].mxu0
        %v1749 = vpop.f32.mrb[0].mxu0
        %v1750 = vadd.f32 %v1655, %v1749
        %v1751 = vpop.f32.mrb[0].mxu0
        %1752 = vmatprep.mubr.bf16.mxu0 0
        %1753 = vmatmul.mubr.bf16.gmra.mrb[0].mxu0 %v1687
        %v1754 = vpop.f32.mrb[0].mxu0
        %v1755 = vadd.f32 %v1656, %v1754
        %v1756 = vpop.f32.mrb[0].mxu0
        %v1757 = vpop.f32.mrb[0].mxu0
        %v1758 = vadd.f32 %v1657, %v1757
        %v1759 = vpop.f32.mrb[0].mxu0
        %1760 = vmatprep.mubr.bf16.mxu0 0
        %1761 = vmatmul.mubr.bf16.gmra.mrb[0].mxu0 %v1690
        %v1762 = vpop.f32.mrb[0].mxu0
        %v1763 = vadd.f32 %v1658, %v1762
        %v1764 = vpop.f32.mrb[0].mxu0
        %v1765 = vpop.f32.mrb[0].mxu0
        %v1766 = vadd.f32 %v1659, %v1765
        %v1767 = vpop.f32.mrb[0].mxu0
        %1768 = vmatprep.mubr.bf16.mxu0 0
        %1769 = vmatmul.mubr.bf16.gmra.mrb[0].mxu0 %v1693
        %v1770 = vpop.f32.mrb[0].mxu0
        %v1771 = vadd.f32 %v1660, %v1770
        %v1772 = vpop.f32.mrb[0].mxu0
        %v1773 = vpop.f32.mrb[0].mxu0
        %v1774 = vadd.f32 %v1661, %v1773
        %v1775 = vpop.f32.mrb[0].mxu0
        %1776 = vmatprep.mubr.bf16.mxu0 0
        %1777 = vmatmul.mubr.bf16.gmra.mrb[0].mxu0 %v1696
        %v1778 = vpop.f32.mrb[0].mxu0
        %v1779 = vadd.f32 %v1662, %v1778
        %v1780 = vpop.f32.mrb[0].mxu0
        %v1781 = vpop.f32.mrb[0].mxu0
        %v1782 = vadd.f32 %v1663, %v1781
        %v1783 = vpop.f32.mrb[0].mxu0
        %1784 = vmatprep.mubr.bf16.mxu0 0
        %1785 = vmatmul.mubr.bf16.gmra.mrb[0].mxu0 %v1699
        %v1786 = vpop.f32.mrb[0].mxu0
        %v1787 = vadd.f32 %v1664, %v1786
        %v1788 = vpop.f32.mrb[0].mxu0
        %v1789 = vpop.f32.mrb[0].mxu0
        %v1790 = vadd.f32 %v1665, %v1789
        %v1791 = vpop.f32.mrb[0].mxu0
        %1792 = vmatprep.mubr.bf16.mxu0 0
        %1793 = vmatmul.mubr.bf16.gmra.mrb[0].mxu0 %v1702
        %v1794 = vpop.f32.mrb[0].mxu0
        %v1795 = vadd.f32 %v1666, %v1794
        %v1796 = vpop.f32.mrb[0].mxu0
        %v1797 = vpop.f32.mrb[0].mxu0
        %v1798 = vadd.f32 %v1667, %v1797
        %v1799 = vpop.f32.mrb[0].mxu0
        %1800 = vdwg.mxu0
        %1801 = vst [vmem:[%s232] sm:$0xff] %v1739
        %1802 = vst [vmem:[%s232 + $0x8] sm:$0xff] %v1742
        %1803 = vst [vmem:[%s232 + $0x10] sm:$0xff] %v1747
        %1804 = vst [vmem:[%s232 + $0x18] sm:$0xff] %v1750
        %1805 = vst [vmem:[%s232 + $0x20] sm:$0xff] %v1755
        %1806 = vst [vmem:[%s232 + $0x28] sm:$0xff] %v1758
        %1807 = vst [vmem:[%s232 + $0x30] sm:$0xff] %v1763
        %1808 = vst [vmem:[%s232 + $0x38] sm:$0xff] %v1766
        %1809 = vst [vmem:[%s232 + $0x40] sm:$0xff] %v1771
        %1810 = vst [vmem:[%s232 + $0x48] sm:$0xff] %v1774
        %1811 = vst [vmem:[%s232 + $0x50] sm:$0xff] %v1779
        %1812 = vst [vmem:[%s232 + $0x58] sm:$0xff] %v1782
        %1813 = vst [vmem:[%s232 + $0x60] sm:$0xff] %v1787
        %1814 = vst [vmem:[%s232 + $0x68] sm:$0xff] %v1790
        %1815 = vst [vmem:[%s232 + $0x70] sm:$0xff] %v1795
        %1816 = vst [vmem:[%s232 + $0x78] sm:$0xff] %v1798
        %s1817 = sand.u32 %s123, 1
        %s1818 = scalar_lea.sflag [#allocation4], %s1817
        %s1819 = sand.u32 %s123, 1
        %s1820 = smul.addr %s1819, 128
        %s1821 = scalar_lea.vmem [#allocation5], %s1820
        // Predicated region
        $region41: #{tpu_custom_call.1} parent=35 // pred_check
          %p1822 = pneg %p133
        $region42: #{tpu_custom_call.1} parent=35 // pred_check_branch
          %1824 = sbr.rel (%p1822) target = $region44
        $region43: #{tpu_custom_call.1} parent=35 // pred_region
          %s1825 = smul.u32 16, %s21
          %s1827 = ssub.s32 2048, 2048
          %1828 = vsyncadd %s1818, %s1827
          %s1829 = smul.addr %s1825, 128
          %s1830 = scalar_lea.hbm %s4, %s1829
          %s1831 = sshll.u32 %s1821, 4
          %s1832 = int_to_ptr.vmem [resolvable:$true] %s1831
          %1837 = dma.vmem_to_hbm [thread:$0]  %s1832, 2048, %s1830, %s1818, 128, 128, 8
        $region44: #{tpu_custom_call.1} parent=35 // pred_fallthru
          _
      $region36: #{tpu_custom_call.1} parent=5 // pred_fallthru
        _
      %p1838 = scmp.le.s32.totalorder 2, %s16
      // Predicated region
      $region45: #{tpu_custom_call.1} parent=5 // pred_check
        %p1839 = pneg %p1838
      $region46: #{tpu_custom_call.1} parent=5 // pred_check_branch
        %1841 = sbr.rel (%p1839) target = $region48
      $region47: #{tpu_custom_call.1} parent=5 // pred_region
        %s1842 = ssub.s32 %s16, 2
        // Predicated region
        $region49: #{tpu_custom_call.1} parent=47 // pred_check
          %p1843 = pneg %p139
        $region50: #{tpu_custom_call.1} parent=47 // pred_check_branch
          %1845 = sbr.rel (%p1843) target = $region52
        $region51: #{tpu_custom_call.1} parent=47 // pred_region
          %s1846 = sand.u32 %s124, 1
          %s1847 = scalar_lea.sflag [#allocation4], %s1846
          %s1848 = sand.u32 %s124, 1
          %s1849 = smul.addr %s1848, 128
          %s1850 = scalar_lea.vmem [#allocation5], %s1849
          %1851 = dma.done %s1847, 2048
        $region52: #{tpu_custom_call.1} parent=47 // pred_fallthru
          _
      $region48: #{tpu_custom_call.1} parent=5 // pred_fallthru
        _
    $region6: #{tpu_custom_call.1} parent=1 // loop_footer
      %s20 = sadd.s32 1, %s16
    $region7: #{tpu_custom_call.1} parent=1 // loop_footer_branch
      %15 = sbr.rel target = $region3
    $region8: #{tpu_custom_call.1} parent=1 // loop_exit
      _
    %1852 = vsyncpa [#allocation3], 1
    %s1853 = scalar_lea.sflag [#allocation3], 1
    %1854 = vsyncpa %s1853, 1
    %1855 = vsyncpa [#allocation4], 1
    %s1856 = scalar_lea.sflag [#allocation4], 1
    %1857 = vsyncpa %s1856, 1

</llo_original>
